<compile_context>
chip_gen: v5e
topology: v5e:2x2
jax: 0.10.0
libtpu: 0.0.40
codegen_flags: <defaults>
</compile_context>

<pallas_src>
import functools

import jax
import jax.numpy as jnp
from jax.experimental import pallas as pl
from jax.experimental.pallas import tpu as pltpu


def _wrap_pad_kernel(x_ref, o_ref, *, size):
    """x_ref: (Bt, D, H, W) -> o_ref: (Bt, D+2s, H+2s, W+2s), periodic ('wrap') padding."""
    s = size
    _, D, H, W = x_ref.shape

    # ---- interior depths [s, s+D): body + H/W halos via direct sub-slice stores
    # (no concatenates -> no full-tile VMEM temps, ~3x less store traffic).
    # body
    o_ref[:, s:s + D, s:s + H, s:s + W] = x_ref[...]
    # H (sublane-axis) halo bands
    o_ref[:, s:s + D, 0:s, s:s + W] = x_ref[:, :, H - s:H, :]
    o_ref[:, s:s + D, s + H:s + H + s, s:s + W] = x_ref[:, :, 0:s, :]
    # W (lane-axis) halo bands
    o_ref[:, s:s + D, s:s + H, 0:s] = x_ref[:, :, :, W - s:W]
    o_ref[:, s:s + D, s:s + H, s + W:s + W + s] = x_ref[:, :, :, 0:s]
    # corners
    o_ref[:, s:s + D, 0:s, 0:s] = x_ref[:, :, H - s:H, W - s:W]
    o_ref[:, s:s + D, 0:s, s + W:s + W + s] = x_ref[:, :, H - s:H, 0:s]
    o_ref[:, s:s + D, s + H:s + H + s, 0:s] = x_ref[:, :, 0:s, W - s:W]
    o_ref[:, s:s + D, s + H:s + H + s, s + W:s + W + s] = x_ref[:, :, 0:s, 0:s]

    # ---- depth halos: copy whole already-HW-padded planes from the resident output
    # block (front halo d < s equals output plane d + D; back halo equals plane d - D).
    o_ref[:, 0:s, :, :] = o_ref[:, D:D + s, :, :]
    o_ref[:, s + D:s + D + s, :, :] = o_ref[:, s:s + s, :, :]


def periodic_padding_3d(x, size, *, vmem_budget_bytes=32 * 1024 * 1024):
    """Equivalent of np.pad(x, ((0,0),(0,0),(s,s),(s,s),(s,s)), 'wrap') for NCDHW input."""
    N, C, D, H, W = x.shape
    s = int(size)
    if s == 0:
        return x
    assert 0 < s <= min(D, H, W), "pad size must satisfy 0 < size <= min(D, H, W)"
    Do, Ho, Wo = D + 2 * s, H + 2 * s, W + 2 * s
    NC = N * C
    x2 = x.reshape(NC, D, H, W)

    # ---- pick batch chunk Bt so double-buffered (in + out) slabs fit the VMEM budget.
    itemsize = jnp.dtype(x.dtype).itemsize
    slab_bytes = (D * H * W + Do * Ho * Wo) * itemsize          # one (n, c) slab, in + out
    bt_max = max(1, int(vmem_budget_bytes // (2 * slab_bytes)))  # 2x: pipeline double-buffers
    bt_max = min(bt_max, NC)
    if NC >= 2:  # keep >= 2 grid steps so v7x megacore can shard the parallel axis
        bt_max = min(bt_max, max(1, NC // 2))
    Bt = 1
    for d in range(bt_max, 0, -1):                               # largest divisor of NC
        if NC % d == 0:
            Bt = d
            break
    # TODO(synk): if a single (D,H,W) slab itself exceeds the VMEM budget, tile the depth
    # axis in chunks (wrap only on the 2*size halo depths) instead of whole slabs.

    needed = 2 * Bt * slab_bytes
    vmem_limit = int(min(64 * 2 ** 20, max(32 * 2 ** 20, needed + 4 * 2 ** 20)))

    kernel = functools.partial(_wrap_pad_kernel, size=s)

    out2 = pl.pallas_call(
        kernel,
        out_shape=jax.ShapeDtypeStruct((NC, Do, Ho, Wo), x.dtype),
        grid=(NC // Bt,),
        in_specs=[pl.BlockSpec((Bt, D, H, W), lambda i: (i, 0, 0, 0))],
        out_specs=pl.BlockSpec((Bt, Do, Ho, Wo), lambda i: (i, 0, 0, 0)),
        compiler_params=pltpu.CompilerParams(
            dimension_semantics=("parallel",),
            vmem_limit_bytes=vmem_limit,
        ),
    )(x2)

    return out2.reshape(N, C, Do, Ho, Wo)


if __name__ == "__main__":
    key = jax.random.PRNGKey(0)

    # Config 1: matches the module's intended use (NCDHW volume).
    N, C, D, H, W = 2, 3, 8, 8, 8
    size = 2
    x = jax.random.normal(key, (N, C, D, H, W), dtype=jnp.float32)

    out = jax.block_until_ready(periodic_padding_3d(x, size))
    ref = jnp.pad(x, ((0, 0), (0, 0), (size, size), (size, size), (size, size)), mode="wrap")
    assert out.shape == (N, C, D + 2 * size, H + 2 * size, W + 2 * size)
    assert out.dtype == x.dtype
    assert jnp.array_equal(out, ref)

    # Config 2: non-cubic spatial dims, different pad size.
    key2 = jax.random.PRNGKey(1)
    N2, C2, D2, H2, W2 = 1, 2, 4, 6, 10
    size2 = 3
    x2 = jax.random.normal(key2, (N2, C2, D2, H2, W2), dtype=jnp.float32)
    out2 = jax.block_until_ready(periodic_padding_3d(x2, size2))
    ref2 = jnp.pad(x2, ((0, 0), (0, 0), (size2, size2), (size2, size2), (size2, size2)),
                   mode="wrap")
    assert jnp.array_equal(out2, ref2)

    print("KERNEL_OK")
</pallas_src>

<mosaic_0001>
module attributes {stable_mosaic.version = 11 : i64} {
  func.func @_wrap_pad_kernel(%arg0: i32, %arg1: memref<3x8x8x8xf32, #tpu.memory_space<vmem>>, %arg2: memref<3x12x12x12xf32, #tpu.memory_space<vmem>>) attributes {dimension_semantics = [#tpu.dimension_semantics<parallel>], iteration_bounds = array<i64: 2>, scalar_prefetch = 0 : i64, scratch_operands = 0 : i64, tpu.core_type = #tpu.core_type<tc>, window_params = [{transform_indices = @transform_0, window_bounds = array<i64: 3, 8, 8, 8>}, {transform_indices = @transform_1, window_bounds = array<i64: 3, 12, 12, 12>}]} {
    %c0 = arith.constant 0 : index
    %c0_0 = arith.constant 0 : index
    %c0_1 = arith.constant 0 : index
    %c0_2 = arith.constant 0 : index
    %0 = vector.load %arg1[%c0, %c0_0, %c0_1, %c0_2] : memref<3x8x8x8xf32, #tpu.memory_space<vmem>>, vector<3x8x8x8xf32>
    %c0_3 = arith.constant 0 : index
    %c2 = arith.constant 2 : index
    %c2_4 = arith.constant 2 : index
    %c2_5 = arith.constant 2 : index
    %1 = vector.load %arg2[%c0_3, %c2, %c2_4, %c2_5] : memref<3x12x12x12xf32, #tpu.memory_space<vmem>>, vector<3x8x8x8xf32>
    tpu.vector_store %arg2[%c0_3, %c2, %c2_4, %c2_5], %0 {strides = array<i32>} : memref<3x12x12x12xf32, #tpu.memory_space<vmem>>, vector<3x8x8x8xf32>,
    %c0_6 = arith.constant 0 : index
    %c0_7 = arith.constant 0 : index
    %c6 = arith.constant 6 : index
    %c0_8 = arith.constant 0 : index
    %2 = vector.load %arg1[%c0_6, %c0_7, %c6, %c0_8] : memref<3x8x8x8xf32, #tpu.memory_space<vmem>>, vector<3x8x2x8xf32>
    %c0_9 = arith.constant 0 : index
    %c2_10 = arith.constant 2 : index
    %c0_11 = arith.constant 0 : index
    %c2_12 = arith.constant 2 : index
    %3 = vector.load %arg2[%c0_9, %c2_10, %c0_11, %c2_12] : memref<3x12x12x12xf32, #tpu.memory_space<vmem>>, vector<3x8x2x8xf32>
    tpu.vector_store %arg2[%c0_9, %c2_10, %c0_11, %c2_12], %2 {strides = array<i32>} : memref<3x12x12x12xf32, #tpu.memory_space<vmem>>, vector<3x8x2x8xf32>,
    %c0_13 = arith.constant 0 : index
    %c0_14 = arith.constant 0 : index
    %c0_15 = arith.constant 0 : index
    %c0_16 = arith.constant 0 : index
    %4 = vector.load %arg1[%c0_13, %c0_14, %c0_15, %c0_16] : memref<3x8x8x8xf32, #tpu.memory_space<vmem>>, vector<3x8x2x8xf32>
    %c0_17 = arith.constant 0 : index
    %c2_18 = arith.constant 2 : index
    %c10 = arith.constant 10 : index
    %c2_19 = arith.constant 2 : index
    %5 = vector.load %arg2[%c0_17, %c2_18, %c10, %c2_19] : memref<3x12x12x12xf32, #tpu.memory_space<vmem>>, vector<3x8x2x8xf32>
    tpu.vector_store %arg2[%c0_17, %c2_18, %c10, %c2_19], %4 {strides = array<i32>} : memref<3x12x12x12xf32, #tpu.memory_space<vmem>>, vector<3x8x2x8xf32>,
    %c0_20 = arith.constant 0 : index
    %c0_21 = arith.constant 0 : index
    %c0_22 = arith.constant 0 : index
    %c6_23 = arith.constant 6 : index
    %6 = vector.load %arg1[%c0_20, %c0_21, %c0_22, %c6_23] : memref<3x8x8x8xf32, #tpu.memory_space<vmem>>, vector<3x8x8x2xf32>
    %c0_24 = arith.constant 0 : index
    %c2_25 = arith.constant 2 : index
    %c2_26 = arith.constant 2 : index
    %c0_27 = arith.constant 0 : index
    %7 = vector.load %arg2[%c0_24, %c2_25, %c2_26, %c0_27] : memref<3x12x12x12xf32, #tpu.memory_space<vmem>>, vector<3x8x8x2xf32>
    tpu.vector_store %arg2[%c0_24, %c2_25, %c2_26, %c0_27], %6 {strides = array<i32>} : memref<3x12x12x12xf32, #tpu.memory_space<vmem>>, vector<3x8x8x2xf32>,
    %c0_28 = arith.constant 0 : index
    %c0_29 = arith.constant 0 : index
    %c0_30 = arith.constant 0 : index
    %c0_31 = arith.constant 0 : index
    %8 = vector.load %arg1[%c0_28, %c0_29, %c0_30, %c0_31] : memref<3x8x8x8xf32, #tpu.memory_space<vmem>>, vector<3x8x8x2xf32>
    %c0_32 = arith.constant 0 : index
    %c2_33 = arith.constant 2 : index
    %c2_34 = arith.constant 2 : index
    %c10_35 = arith.constant 10 : index
    %9 = vector.load %arg2[%c0_32, %c2_33, %c2_34, %c10_35] : memref<3x12x12x12xf32, #tpu.memory_space<vmem>>, vector<3x8x8x2xf32>
    tpu.vector_store %arg2[%c0_32, %c2_33, %c2_34, %c10_35], %8 {strides = array<i32>} : memref<3x12x12x12xf32, #tpu.memory_space<vmem>>, vector<3x8x8x2xf32>,
    %c0_36 = arith.constant 0 : index
    %c0_37 = arith.constant 0 : index
    %c6_38 = arith.constant 6 : index
    %c6_39 = arith.constant 6 : index
    %10 = vector.load %arg1[%c0_36, %c0_37, %c6_38, %c6_39] : memref<3x8x8x8xf32, #tpu.memory_space<vmem>>, vector<3x8x2x2xf32>
    %c0_40 = arith.constant 0 : index
    %c2_41 = arith.constant 2 : index
    %c0_42 = arith.constant 0 : index
    %c0_43 = arith.constant 0 : index
    %11 = vector.load %arg2[%c0_40, %c2_41, %c0_42, %c0_43] : memref<3x12x12x12xf32, #tpu.memory_space<vmem>>, vector<3x8x2x2xf32>
    tpu.vector_store %arg2[%c0_40, %c2_41, %c0_42, %c0_43], %10 {strides = array<i32>} : memref<3x12x12x12xf32, #tpu.memory_space<vmem>>, vector<3x8x2x2xf32>,
    %c0_44 = arith.constant 0 : index
    %c0_45 = arith.constant 0 : index
    %c6_46 = arith.constant 6 : index
    %c0_47 = arith.constant 0 : index
    %12 = vector.load %arg1[%c0_44, %c0_45, %c6_46, %c0_47] : memref<3x8x8x8xf32, #tpu.memory_space<vmem>>, vector<3x8x2x2xf32>
    %c0_48 = arith.constant 0 : index
    %c2_49 = arith.constant 2 : index
    %c0_50 = arith.constant 0 : index
    %c10_51 = arith.constant 10 : index
    %13 = vector.load %arg2[%c0_48, %c2_49, %c0_50, %c10_51] : memref<3x12x12x12xf32, #tpu.memory_space<vmem>>, vector<3x8x2x2xf32>
    tpu.vector_store %arg2[%c0_48, %c2_49, %c0_50, %c10_51], %12 {strides = array<i32>} : memref<3x12x12x12xf32, #tpu.memory_space<vmem>>, vector<3x8x2x2xf32>,
    %c0_52 = arith.constant 0 : index
    %c0_53 = arith.constant 0 : index
    %c0_54 = arith.constant 0 : index
    %c6_55 = arith.constant 6 : index
    %14 = vector.load %arg1[%c0_52, %c0_53, %c0_54, %c6_55] : memref<3x8x8x8xf32, #tpu.memory_space<vmem>>, vector<3x8x2x2xf32>
    %c0_56 = arith.constant 0 : index
    %c2_57 = arith.constant 2 : index
    %c10_58 = arith.constant 10 : index
    %c0_59 = arith.constant 0 : index
    %15 = vector.load %arg2[%c0_56, %c2_57, %c10_58, %c0_59] : memref<3x12x12x12xf32, #tpu.memory_space<vmem>>, vector<3x8x2x2xf32>
    tpu.vector_store %arg2[%c0_56, %c2_57, %c10_58, %c0_59], %14 {strides = array<i32>} : memref<3x12x12x12xf32, #tpu.memory_space<vmem>>, vector<3x8x2x2xf32>,
    %c0_60 = arith.constant 0 : index
    %c0_61 = arith.constant 0 : index
    %c0_62 = arith.constant 0 : index
    %c0_63 = arith.constant 0 : index
    %16 = vector.load %arg1[%c0_60, %c0_61, %c0_62, %c0_63] : memref<3x8x8x8xf32, #tpu.memory_space<vmem>>, vector<3x8x2x2xf32>
    %c0_64 = arith.constant 0 : index
    %c2_65 = arith.constant 2 : index
    %c10_66 = arith.constant 10 : index
    %c10_67 = arith.constant 10 : index
    %17 = vector.load %arg2[%c0_64, %c2_65, %c10_66, %c10_67] : memref<3x12x12x12xf32, #tpu.memory_space<vmem>>, vector<3x8x2x2xf32>
    tpu.vector_store %arg2[%c0_64, %c2_65, %c10_66, %c10_67], %16 {strides = array<i32>} : memref<3x12x12x12xf32, #tpu.memory_space<vmem>>, vector<3x8x2x2xf32>,
    %c0_68 = arith.constant 0 : index
    %c8 = arith.constant 8 : index
    %c0_69 = arith.constant 0 : index
    %c0_70 = arith.constant 0 : index
    %18 = vector.load %arg2[%c0_68, %c8, %c0_69, %c0_70] : memref<3x12x12x12xf32, #tpu.memory_space<vmem>>, vector<3x2x12x12xf32>
    %c0_71 = arith.constant 0 : index
    %c0_72 = arith.constant 0 : index
    %c0_73 = arith.constant 0 : index
    %c0_74 = arith.constant 0 : index
    %19 = vector.load %arg2[%c0_71, %c0_72, %c0_73, %c0_74] : memref<3x12x12x12xf32, #tpu.memory_space<vmem>>, vector<3x2x12x12xf32>
    tpu.vector_store %arg2[%c0_71, %c0_72, %c0_73, %c0_74], %18 {strides = array<i32>} : memref<3x12x12x12xf32, #tpu.memory_space<vmem>>, vector<3x2x12x12xf32>,
    %c0_75 = arith.constant 0 : index
    %c2_76 = arith.constant 2 : index
    %c0_77 = arith.constant 0 : index
    %c0_78 = arith.constant 0 : index
    %20 = vector.load %arg2[%c0_75, %c2_76, %c0_77, %c0_78] : memref<3x12x12x12xf32, #tpu.memory_space<vmem>>, vector<3x2x12x12xf32>
    %c0_79 = arith.constant 0 : index
    %c10_80 = arith.constant 10 : index
    %c0_81 = arith.constant 0 : index
    %c0_82 = arith.constant 0 : index
    %21 = vector.load %arg2[%c0_79, %c10_80, %c0_81, %c0_82] : memref<3x12x12x12xf32, #tpu.memory_space<vmem>>, vector<3x2x12x12xf32>
    tpu.vector_store %arg2[%c0_79, %c10_80, %c0_81, %c0_82], %20 {strides = array<i32>} : memref<3x12x12x12xf32, #tpu.memory_space<vmem>>, vector<3x2x12x12xf32>,
    return
  }
  func.func @transform_0(%arg0: i32) -> (i32, i32, i32, i32) {
    %c0_i32 = arith.constant 0 : i32
    %c0_i32_0 = arith.constant 0 : i32
    %c0_i32_1 = arith.constant 0 : i32
    %c0_i32_2 = arith.constant 0 : i32
    return %arg0, %c0_i32, %c0_i32_0, %c0_i32_1 : i32, i32, i32, i32
  }
  func.func @transform_1(%arg0: i32) -> (i32, i32, i32, i32) {
    %c0_i32 = arith.constant 0 : i32
    %c0_i32_0 = arith.constant 0 : i32
    %c0_i32_1 = arith.constant 0 : i32
    %c0_i32_2 = arith.constant 0 : i32
    return %arg0, %c0_i32, %c0_i32_0, %c0_i32_1 : i32, i32, i32, i32
  }
}

</mosaic_0001>

<llo_original>
// kernel: tpu_custom_call.1
$region0: #{tpu_custom_call.1}
  #allocation0 [shape = 'u32[]', space=smem, size = 0x4, offset = 0x4, fixed_abs, tag = 'smem constant byte address 0x4 - core index']
  #allocation1 [shape = 'u32[72,128]{1,0:T(1,128)}', space=vmem, size = 0x9000, scoped, tag = 'internal scratch']
  %s0 = inlined_call_operand.hbm [shape: f32[6,8,8,8], index: 0, kind: input, shape index: {}]
  %s1 = inlined_call_operand.hbm [shape: f32[6,12,12,12], index: 1, kind: output, shape index: {}]
  %s2 = sld [smem:[#allocation0]]
  $region41: #{tpu_custom_call.1} parent=0
    _
  %s4 = ssub.s32 1, %s2
  %s5 = scalar_select 0, %s4, %s2
  $region1: #{tpu_custom_call.1} parent=0
    #allocation2 [shape = 'u8[196608]{0}', space=vmem, size = 0x30000, scoped, tag = 'input window, operand 0']
    #allocation3 [shape = 's32[2]{0}', space=sflag, size = 0x8, scoped, tag = 'scoped memory for tpu_custom_call.1']
    #allocation4 [shape = 's32[2]{0}', space=sflag, size = 0x8, scoped, tag = 'scoped memory for tpu_custom_call.1']
    #allocation5 [shape = 'u8[589824]{0}', space=vmem, size = 0x90000, scoped, tag = 'output window, operand 0']
    %6 = vsyncpa [#allocation3], 0
    %s7 = scalar_lea.sflag [#allocation3], 1
    %8 = vsyncpa %s7, 0
    %9 = vsyncpa [#allocation4], 0
    %s10 = scalar_lea.sflag [#allocation4], 1
    %11 = vsyncpa %s10, 0
    loop: start=0, step=1, limit=4
    $region2: #{tpu_custom_call.1} parent=1 // loop_pre_header
      _
    $region3: #{tpu_custom_call.1} parent=1 // loop_header
      %s13 = sphi 0, %s17
      %p14 = scmp.ge.s32.totalorder %s13, 4
      %s23 = sphi 0, %s25
      %s26 = sphi 0, %s23
      %s27 = sphi 0, %s26
      %s43 = sphi 0, %s27
      %s49 = sphi 0, %s51
      %s52 = sphi 0, %s49
      %s53 = sphi 0, %s52
      %s69 = sphi 0, %s53
    $region4: #{tpu_custom_call.1} parent=1 // loop_header_branch
      %16 = sbr.rel (%p14) target = $region8
    $region5: #{tpu_custom_call.1} parent=1 // loop_body
      %s18 = ssub.s32 %s13, 1
      %s19 = ssub.s32 %s13, 2
      %s20 = sadd.s32 %s13, 1
      %s21 = ssub.s32 %s13, %s20
      %p22 = scmp.eq.s32.totalorder %s21, 0
      %s24 = sadd.s32 %s23, 1
      %s25 = scalar_select %p22, %s23, %s24
      %p28 = pneg %p22
      %p29 = scmp.eq.s32.totalorder %s13, 1
      %p30 = por %p28, %p29
      %p31 = scmp.ne.s32.totalorder %s23, %s26
      %p32 = scmp.eq.s32.totalorder %s13, 0
      %p33 = por %p31, %p32
      %p34 = scmp.ne.s32.totalorder %s23, %s26
      %p35 = scmp.eq.s32.totalorder %s18, 1
      %p36 = por %p34, %p35
      %p37 = scmp.ne.s32.totalorder %s26, %s27
      %p38 = scmp.eq.s32.totalorder %s18, 0
      %p39 = por %p37, %p38
      %p40 = scmp.ne.s32.totalorder %s26, %s27
      %p41 = scmp.eq.s32.totalorder %s19, 1
      %p42 = por %p40, %p41
      %p44 = scmp.ne.s32.totalorder %s27, %s43
      %p45 = scmp.eq.s32.totalorder %s19, 0
      %p46 = por %p44, %p45
      %s47 = ssub.s32 %s13, %s20
      %p48 = scmp.eq.s32.totalorder %s47, 0
      %s50 = sadd.s32 %s49, 1
      %s51 = scalar_select %p48, %s49, %s50
      %p54 = pneg %p48
      %p55 = scmp.eq.s32.totalorder %s13, 1
      %p56 = por %p54, %p55
      %p57 = scmp.ne.s32.totalorder %s49, %s52
      %p58 = scmp.eq.s32.totalorder %s13, 0
      %p59 = por %p57, %p58
      %p60 = scmp.ne.s32.totalorder %s49, %s52
      %p61 = scmp.eq.s32.totalorder %s18, 1
      %p62 = por %p60, %p61
      %p63 = scmp.ne.s32.totalorder %s52, %s53
      %p64 = scmp.eq.s32.totalorder %s18, 0
      %p65 = por %p63, %p64
      %p66 = scmp.ne.s32.totalorder %s52, %s53
      %p67 = scmp.eq.s32.totalorder %s19, 1
      %p68 = por %p66, %p67
      %p70 = scmp.ne.s32.totalorder %s53, %s69
      %p71 = scmp.eq.s32.totalorder %s19, 0
      %p72 = por %p70, %p71
      %p73 = scmp.le.s32.totalorder 1, %s13
      %p74 = scmp.lt.s32.totalorder %s13, 3
      %p75 = pnand %p73, %p74
      %p76 = pneg %p75
      // Predicated region
      $region9: #{tpu_custom_call.1} parent=5 // pred_check
        _
      $region10: #{tpu_custom_call.1} parent=5 // pred_check_branch
        %78 = sbr.rel (%p75) target = $region12
      $region11: #{tpu_custom_call.1} parent=5 // pred_region
        %s79 = ssub.s32 %s13, 1
      $region12: #{tpu_custom_call.1} parent=5 // pred_fallthru
        _
      %p80 = scmp.lt.s32.totalorder %s13, 2
      // Predicated region
      $region13: #{tpu_custom_call.1} parent=5 // pred_check
        %p81 = pneg %p80
      $region14: #{tpu_custom_call.1} parent=5 // pred_check_branch
        %83 = sbr.rel (%p81) target = $region16
      $region15: #{tpu_custom_call.1} parent=5 // pred_region
        // Predicated region
        $region17: #{tpu_custom_call.1} parent=15 // pred_check
          %p84 = pneg %p33
        $region18: #{tpu_custom_call.1} parent=15 // pred_check_branch
          %86 = sbr.rel (%p84) target = $region20
        $region19: #{tpu_custom_call.1} parent=15 // pred_region
          %s87 = sand.u32 %s23, 1
          %s88 = scalar_lea.sflag [#allocation3], %s87
          %s89 = sand.u32 %s23, 1
          %s90 = smul.addr %s89, 192
          %s91 = scalar_lea.vmem [#allocation2], %s90
          %s92 = smul.u32 3, %s13
          %94 = vsyncadd %s88, 0
          %s95 = smul.addr %s92, 8
          %s96 = smul.addr %s95, 8
          %s97 = scalar_lea.hbm %s0, %s96
          %s98 = sshll.u32 %s97, 4
          %s99 = int_to_ptr.hbm [resolvable:$true] %s98
          %s100 = sshll.u32 %s91, 4
          %s101 = int_to_ptr.vmem [resolvable:$true] %s100
          %106 = dma.hbm_to_vmem [thread:$0]  %s99, 3072, %s101, %s88, 128, 128, 8
        $region20: #{tpu_custom_call.1} parent=15 // pred_fallthru
          _
      $region16: #{tpu_custom_call.1} parent=5 // pred_fallthru
        _
      %p107 = scmp.le.s32.totalorder 1, %s13
      %p108 = scmp.lt.s32.totalorder %s13, 3
      %p109 = pnand %p107, %p108
      %p110 = pneg %p109
      // Predicated region
      $region21: #{tpu_custom_call.1} parent=5 // pred_check
        _
      $region22: #{tpu_custom_call.1} parent=5 // pred_check_branch
        %112 = sbr.rel (%p109) target = $region24
      $region23: #{tpu_custom_call.1} parent=5 // pred_region
        %s113 = ssub.s32 %s13, 1
        %s114 = sand.u32 %s26, 1
        %s115 = scalar_lea.sflag [#allocation3], %s114
        %s116 = sand.u32 %s26, 1
        %s117 = smul.addr %s116, 192
        %s118 = scalar_lea.vmem [#allocation2], %s117
        // Predicated region
        $region25: #{tpu_custom_call.1} parent=23 // pred_check
          %p119 = pneg %p39
        $region26: #{tpu_custom_call.1} parent=23 // pred_check_branch
          %121 = sbr.rel (%p119) target = $region28
        $region27: #{tpu_custom_call.1} parent=23 // pred_region
          %123 = dma.done %s115, 3072
        $region28: #{tpu_custom_call.1} parent=23 // pred_fallthru
          _
        %s124 = sand.u32 %s26, 1
        %s125 = scalar_lea.sflag [#allocation3], %s124
        %s126 = sand.u32 %s26, 1
        %s127 = smul.addr %s126, 192
        %s128 = scalar_lea.vmem [#allocation2], %s127
        %p129 = pneg %p39
        %p130 = pneg %p36
        %p131 = pneg %p65
        %p132 = pneg %p62
        %s133 = sand.u32 %s52, 1
        %s134 = scalar_lea.sflag [#allocation4], %s133
        %s135 = sand.u32 %s52, 1
        %s136 = smul.addr %s135, 576
        %s137 = scalar_lea.vmem [#allocation5], %s136
        %s138 = smul.u32 3, %s18
        %s139 = smul.u32 3, %s18
        %v140 = vld [vmem:[%s118] sm:$0xff]
        %v141 = vld [vmem:[%s118 + $0x8] sm:$0xff]
        %v142 = vld [vmem:[%s118 + $0x10] sm:$0xff]
        %v143 = vld [vmem:[%s118 + $0x18] sm:$0xff]
        %v144 = vld [vmem:[%s118 + $0x20] sm:$0xff]
        %v145 = vld [vmem:[%s118 + $0x28] sm:$0xff]
        %v146 = vld [vmem:[%s118 + $0x30] sm:$0xff]
        %v147 = vld [vmem:[%s118 + $0x38] sm:$0xff]
        %v148 = vld [vmem:[%s118 + $0x40] sm:$0xff]
        %v149 = vld [vmem:[%s118 + $0x48] sm:$0xff]
        %v150 = vld [vmem:[%s118 + $0x50] sm:$0xff]
        %v151 = vld [vmem:[%s118 + $0x58] sm:$0xff]
        %v152 = vld [vmem:[%s118 + $0x60] sm:$0xff]
        %v153 = vld [vmem:[%s118 + $0x68] sm:$0xff]
        %v154 = vld [vmem:[%s118 + $0x70] sm:$0xff]
        %v155 = vld [vmem:[%s118 + $0x78] sm:$0xff]
        %v156 = vld [vmem:[%s118 + $0x80] sm:$0xff]
        %v157 = vld [vmem:[%s118 + $0x88] sm:$0xff]
        %v158 = vld [vmem:[%s118 + $0x90] sm:$0xff]
        %v159 = vld [vmem:[%s118 + $0x98] sm:$0xff]
        %v160 = vld [vmem:[%s118 + $0xa0] sm:$0xff]
        %v161 = vld [vmem:[%s118 + $0xa8] sm:$0xff]
        %v162 = vld [vmem:[%s118 + $0xb0] sm:$0xff]
        %v163 = vld [vmem:[%s118 + $0xb8] sm:$0xff]
        %188 = vrot.lane.b32.xlu0 %v140, 2
        %v189 = vpop.permute.xlu0 %188
        %190 = vrot.lane.b32.xlu0 %v141, 2
        %v191 = vpop.permute.xlu0 %190
        %192 = vrot.lane.b32.xlu0 %v142, 2
        %v193 = vpop.permute.xlu0 %192
        %194 = vrot.lane.b32.xlu0 %v143, 2
        %v195 = vpop.permute.xlu0 %194
        %196 = vrot.lane.b32.xlu0 %v144, 2
        %v197 = vpop.permute.xlu0 %196
        %198 = vrot.lane.b32.xlu0 %v145, 2
        %v199 = vpop.permute.xlu0 %198
        %200 = vrot.lane.b32.xlu0 %v146, 2
        %v201 = vpop.permute.xlu0 %200
        %202 = vrot.lane.b32.xlu0 %v147, 2
        %v203 = vpop.permute.xlu0 %202
        %204 = vrot.lane.b32.xlu0 %v148, 2
        %v205 = vpop.permute.xlu0 %204
        %206 = vrot.lane.b32.xlu0 %v149, 2
        %v207 = vpop.permute.xlu0 %206
        %208 = vrot.lane.b32.xlu0 %v150, 2
        %v209 = vpop.permute.xlu0 %208
        %210 = vrot.lane.b32.xlu0 %v151, 2
        %v211 = vpop.permute.xlu0 %210
        %212 = vrot.lane.b32.xlu0 %v152, 2
        %v213 = vpop.permute.xlu0 %212
        %214 = vrot.lane.b32.xlu0 %v153, 2
        %v215 = vpop.permute.xlu0 %214
        %216 = vrot.lane.b32.xlu0 %v154, 2
        %v217 = vpop.permute.xlu0 %216
        %218 = vrot.lane.b32.xlu0 %v155, 2
        %v219 = vpop.permute.xlu0 %218
        %220 = vrot.lane.b32.xlu0 %v156, 2
        %v221 = vpop.permute.xlu0 %220
        %222 = vrot.lane.b32.xlu0 %v157, 2
        %v223 = vpop.permute.xlu0 %222
        %224 = vrot.lane.b32.xlu0 %v158, 2
        %v225 = vpop.permute.xlu0 %224
        %226 = vrot.lane.b32.xlu0 %v159, 2
        %v227 = vpop.permute.xlu0 %226
        %228 = vrot.lane.b32.xlu0 %v160, 2
        %v229 = vpop.permute.xlu0 %228
        %230 = vrot.lane.b32.xlu0 %v161, 2
        %v231 = vpop.permute.xlu0 %230
        %232 = vrot.lane.b32.xlu0 %v162, 2
        %v233 = vpop.permute.xlu0 %232
        %234 = vrot.lane.b32.xlu0 %v163, 2
        %v235 = vpop.permute.xlu0 %234
        %s260 = scalar_lea.vmem %s137, 32 [#allocation5]
        %vm261 = vcmask 80912
        %262 = vst.msk [vmem:[%s260 + $0x2] sm:$0xff] %vm261, %v189
        %263 = vst.msk [vmem:[%s260 + $0x12] sm:$0xff] %vm261, %v191
        %264 = vst.msk [vmem:[%s260 + $0x22] sm:$0xff] %vm261, %v193
        %265 = vst.msk [vmem:[%s260 + $0x32] sm:$0xff] %vm261, %v195
        %266 = vst.msk [vmem:[%s260 + $0x42] sm:$0xff] %vm261, %v197
        %267 = vst.msk [vmem:[%s260 + $0x52] sm:$0xff] %vm261, %v199
        %268 = vst.msk [vmem:[%s260 + $0x62] sm:$0xff] %vm261, %v201
        %269 = vst.msk [vmem:[%s260 + $0x72] sm:$0xff] %vm261, %v203
        %270 = vst.msk [vmem:[%s260 + $0xc2] sm:$0xff] %vm261, %v205
        %271 = vst.msk [vmem:[%s260 + $0xd2] sm:$0xff] %vm261, %v207
        %272 = vst.msk [vmem:[%s260 + $0xe2] sm:$0xff] %vm261, %v209
        %273 = vst.msk [vmem:[%s260 + $0xf2] sm:$0xff] %vm261, %v211
        %274 = vst.msk [vmem:[%s260 + $0x102] sm:$0xff] %vm261, %v213
        %275 = vst.msk [vmem:[%s260 + $0x112] sm:$0xff] %vm261, %v215
        %276 = vst.msk [vmem:[%s260 + $0x122] sm:$0xff] %vm261, %v217
        %277 = vst.msk [vmem:[%s260 + $0x132] sm:$0xff] %vm261, %v219
        %278 = vst.msk [vmem:[%s260 + $0x182] sm:$0xff] %vm261, %v221
        %279 = vst.msk [vmem:[%s260 + $0x192] sm:$0xff] %vm261, %v223
        %280 = vst.msk [vmem:[%s260 + $0x1a2] sm:$0xff] %vm261, %v225
        %281 = vst.msk [vmem:[%s260 + $0x1b2] sm:$0xff] %vm261, %v227
        %282 = vst.msk [vmem:[%s260 + $0x1c2] sm:$0xff] %vm261, %v229
        %283 = vst.msk [vmem:[%s260 + $0x1d2] sm:$0xff] %vm261, %v231
        %284 = vst.msk [vmem:[%s260 + $0x1e2] sm:$0xff] %vm261, %v233
        %285 = vst.msk [vmem:[%s260 + $0x1f2] sm:$0xff] %vm261, %v235
        %v286 = vld [vmem:[%s118 + $0x6] sm:$0x3]
        %v287 = vld [vmem:[%s118 + $0xe] sm:$0x3]
        %v288 = vld [vmem:[%s118 + $0x16] sm:$0x3]
        %v289 = vld [vmem:[%s118 + $0x1e] sm:$0x3]
        %v290 = vld [vmem:[%s118 + $0x26] sm:$0x3]
        %v291 = vld [vmem:[%s118 + $0x2e] sm:$0x3]
        %v292 = vld [vmem:[%s118 + $0x36] sm:$0x3]
        %v293 = vld [vmem:[%s118 + $0x3e] sm:$0x3]
        %v294 = vld [vmem:[%s118 + $0x46] sm:$0x3]
        %v295 = vld [vmem:[%s118 + $0x4e] sm:$0x3]
        %v296 = vld [vmem:[%s118 + $0x56] sm:$0x3]
        %v297 = vld [vmem:[%s118 + $0x5e] sm:$0x3]
        %v298 = vld [vmem:[%s118 + $0x66] sm:$0x3]
        %v299 = vld [vmem:[%s118 + $0x6e] sm:$0x3]
        %v300 = vld [vmem:[%s118 + $0x76] sm:$0x3]
        %v301 = vld [vmem:[%s118 + $0x7e] sm:$0x3]
        %v302 = vld [vmem:[%s118 + $0x86] sm:$0x3]
        %v303 = vld [vmem:[%s118 + $0x8e] sm:$0x3]
        %v304 = vld [vmem:[%s118 + $0x96] sm:$0x3]
        %v305 = vld [vmem:[%s118 + $0x9e] sm:$0x3]
        %v306 = vld [vmem:[%s118 + $0xa6] sm:$0x3]
        %v307 = vld [vmem:[%s118 + $0xae] sm:$0x3]
        %v308 = vld [vmem:[%s118 + $0xb6] sm:$0x3]
        %v309 = vld [vmem:[%s118 + $0xbe] sm:$0x3]
        %334 = vrot.lane.b32.xlu0 %v286, 2
        %v335 = vpop.permute.xlu0 %334
        %336 = vrot.lane.b32.xlu0 %v287, 2
        %v337 = vpop.permute.xlu0 %336
        %338 = vrot.lane.b32.xlu0 %v288, 2
        %v339 = vpop.permute.xlu0 %338
        %340 = vrot.lane.b32.xlu0 %v289, 2
        %v341 = vpop.permute.xlu0 %340
        %342 = vrot.lane.b32.xlu0 %v290, 2
        %v343 = vpop.permute.xlu0 %342
        %344 = vrot.lane.b32.xlu0 %v291, 2
        %v345 = vpop.permute.xlu0 %344
        %346 = vrot.lane.b32.xlu0 %v292, 2
        %v347 = vpop.permute.xlu0 %346
        %348 = vrot.lane.b32.xlu0 %v293, 2
        %v349 = vpop.permute.xlu0 %348
        %350 = vrot.lane.b32.xlu0 %v294, 2
        %v351 = vpop.permute.xlu0 %350
        %352 = vrot.lane.b32.xlu0 %v295, 2
        %v353 = vpop.permute.xlu0 %352
        %354 = vrot.lane.b32.xlu0 %v296, 2
        %v355 = vpop.permute.xlu0 %354
        %356 = vrot.lane.b32.xlu0 %v297, 2
        %v357 = vpop.permute.xlu0 %356
        %358 = vrot.lane.b32.xlu0 %v298, 2
        %v359 = vpop.permute.xlu0 %358
        %360 = vrot.lane.b32.xlu0 %v299, 2
        %v361 = vpop.permute.xlu0 %360
        %362 = vrot.lane.b32.xlu0 %v300, 2
        %v363 = vpop.permute.xlu0 %362
        %364 = vrot.lane.b32.xlu0 %v301, 2
        %v365 = vpop.permute.xlu0 %364
        %366 = vrot.lane.b32.xlu0 %v302, 2
        %v367 = vpop.permute.xlu0 %366
        %368 = vrot.lane.b32.xlu0 %v303, 2
        %v369 = vpop.permute.xlu0 %368
        %370 = vrot.lane.b32.xlu0 %v304, 2
        %v371 = vpop.permute.xlu0 %370
        %372 = vrot.lane.b32.xlu0 %v305, 2
        %v373 = vpop.permute.xlu0 %372
        %374 = vrot.lane.b32.xlu0 %v306, 2
        %v375 = vpop.permute.xlu0 %374
        %376 = vrot.lane.b32.xlu0 %v307, 2
        %v377 = vpop.permute.xlu0 %376
        %378 = vrot.lane.b32.xlu0 %v308, 2
        %v379 = vpop.permute.xlu0 %378
        %380 = vrot.lane.b32.xlu0 %v309, 2
        %v381 = vpop.permute.xlu0 %380
        %vm406 = vcmask 74768
        %407 = vst.msk [vmem:[%s260] sm:$0x3] %vm406, %v335
        %408 = vst.msk [vmem:[%s260 + $0x10] sm:$0x3] %vm406, %v337
        %409 = vst.msk [vmem:[%s260 + $0x20] sm:$0x3] %vm406, %v339
        %410 = vst.msk [vmem:[%s260 + $0x30] sm:$0x3] %vm406, %v341
        %411 = vst.msk [vmem:[%s260 + $0x40] sm:$0x3] %vm406, %v343
        %412 = vst.msk [vmem:[%s260 + $0x50] sm:$0x3] %vm406, %v345
        %413 = vst.msk [vmem:[%s260 + $0x60] sm:$0x3] %vm406, %v347
        %414 = vst.msk [vmem:[%s260 + $0x70] sm:$0x3] %vm406, %v349
        %415 = vst.msk [vmem:[%s260 + $0xc0] sm:$0x3] %vm406, %v351
        %416 = vst.msk [vmem:[%s260 + $0xd0] sm:$0x3] %vm406, %v353
        %417 = vst.msk [vmem:[%s260 + $0xe0] sm:$0x3] %vm406, %v355
        %418 = vst.msk [vmem:[%s260 + $0xf0] sm:$0x3] %vm406, %v357
        %419 = vst.msk [vmem:[%s260 + $0x100] sm:$0x3] %vm406, %v359
        %420 = vst.msk [vmem:[%s260 + $0x110] sm:$0x3] %vm406, %v361
        %421 = vst.msk [vmem:[%s260 + $0x120] sm:$0x3] %vm406, %v363
        %422 = vst.msk [vmem:[%s260 + $0x130] sm:$0x3] %vm406, %v365
        %423 = vst.msk [vmem:[%s260 + $0x180] sm:$0x3] %vm406, %v367
        %424 = vst.msk [vmem:[%s260 + $0x190] sm:$0x3] %vm406, %v369
        %425 = vst.msk [vmem:[%s260 + $0x1a0] sm:$0x3] %vm406, %v371
        %426 = vst.msk [vmem:[%s260 + $0x1b0] sm:$0x3] %vm406, %v373
        %427 = vst.msk [vmem:[%s260 + $0x1c0] sm:$0x3] %vm406, %v375
        %428 = vst.msk [vmem:[%s260 + $0x1d0] sm:$0x3] %vm406, %v377
        %429 = vst.msk [vmem:[%s260 + $0x1e0] sm:$0x3] %vm406, %v379
        %430 = vst.msk [vmem:[%s260 + $0x1f0] sm:$0x3] %vm406, %v381
        %v431 = vld [vmem:[%s118] sm:$0x3]
        %v432 = vld [vmem:[%s118 + $0x8] sm:$0x3]
        %v433 = vld [vmem:[%s118 + $0x10] sm:$0x3]
        %v434 = vld [vmem:[%s118 + $0x18] sm:$0x3]
        %v435 = vld [vmem:[%s118 + $0x20] sm:$0x3]
        %v436 = vld [vmem:[%s118 + $0x28] sm:$0x3]
        %v437 = vld [vmem:[%s118 + $0x30] sm:$0x3]
        %v438 = vld [vmem:[%s118 + $0x38] sm:$0x3]
        %v439 = vld [vmem:[%s118 + $0x40] sm:$0x3]
        %v440 = vld [vmem:[%s118 + $0x48] sm:$0x3]
        %v441 = vld [vmem:[%s118 + $0x50] sm:$0x3]
        %v442 = vld [vmem:[%s118 + $0x58] sm:$0x3]
        %v443 = vld [vmem:[%s118 + $0x60] sm:$0x3]
        %v444 = vld [vmem:[%s118 + $0x68] sm:$0x3]
        %v445 = vld [vmem:[%s118 + $0x70] sm:$0x3]
        %v446 = vld [vmem:[%s118 + $0x78] sm:$0x3]
        %v447 = vld [vmem:[%s118 + $0x80] sm:$0x3]
        %v448 = vld [vmem:[%s118 + $0x88] sm:$0x3]
        %v449 = vld [vmem:[%s118 + $0x90] sm:$0x3]
        %v450 = vld [vmem:[%s118 + $0x98] sm:$0x3]
        %v451 = vld [vmem:[%s118 + $0xa0] sm:$0x3]
        %v452 = vld [vmem:[%s118 + $0xa8] sm:$0x3]
        %v453 = vld [vmem:[%s118 + $0xb0] sm:$0x3]
        %v454 = vld [vmem:[%s118 + $0xb8] sm:$0x3]
        %479 = vrot.lane.b32.xlu0 %v431, 2
        %v480 = vpop.permute.xlu0 %479
        %481 = vrot.lane.b32.xlu0 %v432, 2
        %v482 = vpop.permute.xlu0 %481
        %483 = vrot.lane.b32.xlu0 %v433, 2
        %v484 = vpop.permute.xlu0 %483
        %485 = vrot.lane.b32.xlu0 %v434, 2
        %v486 = vpop.permute.xlu0 %485
        %487 = vrot.lane.b32.xlu0 %v435, 2
        %v488 = vpop.permute.xlu0 %487
        %489 = vrot.lane.b32.xlu0 %v436, 2
        %v490 = vpop.permute.xlu0 %489
        %491 = vrot.lane.b32.xlu0 %v437, 2
        %v492 = vpop.permute.xlu0 %491
        %493 = vrot.lane.b32.xlu0 %v438, 2
        %v494 = vpop.permute.xlu0 %493
        %495 = vrot.lane.b32.xlu0 %v439, 2
        %v496 = vpop.permute.xlu0 %495
        %497 = vrot.lane.b32.xlu0 %v440, 2
        %v498 = vpop.permute.xlu0 %497
        %499 = vrot.lane.b32.xlu0 %v441, 2
        %v500 = vpop.permute.xlu0 %499
        %501 = vrot.lane.b32.xlu0 %v442, 2
        %v502 = vpop.permute.xlu0 %501
        %503 = vrot.lane.b32.xlu0 %v443, 2
        %v504 = vpop.permute.xlu0 %503
        %505 = vrot.lane.b32.xlu0 %v444, 2
        %v506 = vpop.permute.xlu0 %505
        %507 = vrot.lane.b32.xlu0 %v445, 2
        %v508 = vpop.permute.xlu0 %507
        %509 = vrot.lane.b32.xlu0 %v446, 2
        %v510 = vpop.permute.xlu0 %509
        %511 = vrot.lane.b32.xlu0 %v447, 2
        %v512 = vpop.permute.xlu0 %511
        %513 = vrot.lane.b32.xlu0 %v448, 2
        %v514 = vpop.permute.xlu0 %513
        %515 = vrot.lane.b32.xlu0 %v449, 2
        %v516 = vpop.permute.xlu0 %515
        %517 = vrot.lane.b32.xlu0 %v450, 2
        %v518 = vpop.permute.xlu0 %517
        %519 = vrot.lane.b32.xlu0 %v451, 2
        %v520 = vpop.permute.xlu0 %519
        %521 = vrot.lane.b32.xlu0 %v452, 2
        %v522 = vpop.permute.xlu0 %521
        %523 = vrot.lane.b32.xlu0 %v453, 2
        %v524 = vpop.permute.xlu0 %523
        %525 = vrot.lane.b32.xlu0 %v454, 2
        %v526 = vpop.permute.xlu0 %525
        %551 = vst.msk [vmem:[%s260 + $0xa] sm:$0x3] %vm406, %v480
        %552 = vst.msk [vmem:[%s260 + $0x1a] sm:$0x3] %vm406, %v482
        %553 = vst.msk [vmem:[%s260 + $0x2a] sm:$0x3] %vm406, %v484
        %554 = vst.msk [vmem:[%s260 + $0x3a] sm:$0x3] %vm406, %v486
        %555 = vst.msk [vmem:[%s260 + $0x4a] sm:$0x3] %vm406, %v488
        %556 = vst.msk [vmem:[%s260 + $0x5a] sm:$0x3] %vm406, %v490
        %557 = vst.msk [vmem:[%s260 + $0x6a] sm:$0x3] %vm406, %v492
        %558 = vst.msk [vmem:[%s260 + $0x7a] sm:$0x3] %vm406, %v494
        %559 = vst.msk [vmem:[%s260 + $0xca] sm:$0x3] %vm406, %v496
        %560 = vst.msk [vmem:[%s260 + $0xda] sm:$0x3] %vm406, %v498
        %561 = vst.msk [vmem:[%s260 + $0xea] sm:$0x3] %vm406, %v500
        %562 = vst.msk [vmem:[%s260 + $0xfa] sm:$0x3] %vm406, %v502
        %563 = vst.msk [vmem:[%s260 + $0x10a] sm:$0x3] %vm406, %v504
        %564 = vst.msk [vmem:[%s260 + $0x11a] sm:$0x3] %vm406, %v506
        %565 = vst.msk [vmem:[%s260 + $0x12a] sm:$0x3] %vm406, %v508
        %566 = vst.msk [vmem:[%s260 + $0x13a] sm:$0x3] %vm406, %v510
        %567 = vst.msk [vmem:[%s260 + $0x18a] sm:$0x3] %vm406, %v512
        %568 = vst.msk [vmem:[%s260 + $0x19a] sm:$0x3] %vm406, %v514
        %569 = vst.msk [vmem:[%s260 + $0x1aa] sm:$0x3] %vm406, %v516
        %570 = vst.msk [vmem:[%s260 + $0x1ba] sm:$0x3] %vm406, %v518
        %571 = vst.msk [vmem:[%s260 + $0x1ca] sm:$0x3] %vm406, %v520
        %572 = vst.msk [vmem:[%s260 + $0x1da] sm:$0x3] %vm406, %v522
        %573 = vst.msk [vmem:[%s260 + $0x1ea] sm:$0x3] %vm406, %v524
        %574 = vst.msk [vmem:[%s260 + $0x1fa] sm:$0x3] %vm406, %v526
        %v575 = vld [vmem:[%s118] sm:$0xff]
        %v576 = vld [vmem:[%s118 + $0x8] sm:$0xff]
        %v577 = vld [vmem:[%s118 + $0x10] sm:$0xff]
        %v578 = vld [vmem:[%s118 + $0x18] sm:$0xff]
        %v579 = vld [vmem:[%s118 + $0x20] sm:$0xff]
        %v580 = vld [vmem:[%s118 + $0x28] sm:$0xff]
        %v581 = vld [vmem:[%s118 + $0x30] sm:$0xff]
        %v582 = vld [vmem:[%s118 + $0x38] sm:$0xff]
        %v583 = vld [vmem:[%s118 + $0x40] sm:$0xff]
        %v584 = vld [vmem:[%s118 + $0x48] sm:$0xff]
        %v585 = vld [vmem:[%s118 + $0x50] sm:$0xff]
        %v586 = vld [vmem:[%s118 + $0x58] sm:$0xff]
        %v587 = vld [vmem:[%s118 + $0x60] sm:$0xff]
        %v588 = vld [vmem:[%s118 + $0x68] sm:$0xff]
        %v589 = vld [vmem:[%s118 + $0x70] sm:$0xff]
        %v590 = vld [vmem:[%s118 + $0x78] sm:$0xff]
        %v591 = vld [vmem:[%s118 + $0x80] sm:$0xff]
        %v592 = vld [vmem:[%s118 + $0x88] sm:$0xff]
        %v593 = vld [vmem:[%s118 + $0x90] sm:$0xff]
        %v594 = vld [vmem:[%s118 + $0x98] sm:$0xff]
        %v595 = vld [vmem:[%s118 + $0xa0] sm:$0xff]
        %v596 = vld [vmem:[%s118 + $0xa8] sm:$0xff]
        %v597 = vld [vmem:[%s118 + $0xb0] sm:$0xff]
        %v598 = vld [vmem:[%s118 + $0xb8] sm:$0xff]
        %623 = vrot.lane.b32.xlu0 %v575, 122
        %v624 = vpop.permute.xlu0 %623
        %625 = vrot.lane.b32.xlu0 %v576, 122
        %v626 = vpop.permute.xlu0 %625
        %627 = vrot.lane.b32.xlu0 %v577, 122
        %v628 = vpop.permute.xlu0 %627
        %629 = vrot.lane.b32.xlu0 %v578, 122
        %v630 = vpop.permute.xlu0 %629
        %631 = vrot.lane.b32.xlu0 %v579, 122
        %v632 = vpop.permute.xlu0 %631
        %633 = vrot.lane.b32.xlu0 %v580, 122
        %v634 = vpop.permute.xlu0 %633
        %635 = vrot.lane.b32.xlu0 %v581, 122
        %v636 = vpop.permute.xlu0 %635
        %637 = vrot.lane.b32.xlu0 %v582, 122
        %v638 = vpop.permute.xlu0 %637
        %639 = vrot.lane.b32.xlu0 %v583, 122
        %v640 = vpop.permute.xlu0 %639
        %641 = vrot.lane.b32.xlu0 %v584, 122
        %v642 = vpop.permute.xlu0 %641
        %643 = vrot.lane.b32.xlu0 %v585, 122
        %v644 = vpop.permute.xlu0 %643
        %645 = vrot.lane.b32.xlu0 %v586, 122
        %v646 = vpop.permute.xlu0 %645
        %647 = vrot.lane.b32.xlu0 %v587, 122
        %v648 = vpop.permute.xlu0 %647
        %649 = vrot.lane.b32.xlu0 %v588, 122
        %v650 = vpop.permute.xlu0 %649
        %651 = vrot.lane.b32.xlu0 %v589, 122
        %v652 = vpop.permute.xlu0 %651
        %653 = vrot.lane.b32.xlu0 %v590, 122
        %v654 = vpop.permute.xlu0 %653
        %655 = vrot.lane.b32.xlu0 %v591, 122
        %v656 = vpop.permute.xlu0 %655
        %657 = vrot.lane.b32.xlu0 %v592, 122
        %v658 = vpop.permute.xlu0 %657
        %659 = vrot.lane.b32.xlu0 %v593, 122
        %v660 = vpop.permute.xlu0 %659
        %661 = vrot.lane.b32.xlu0 %v594, 122
        %v662 = vpop.permute.xlu0 %661
        %663 = vrot.lane.b32.xlu0 %v595, 122
        %v664 = vpop.permute.xlu0 %663
        %665 = vrot.lane.b32.xlu0 %v596, 122
        %v666 = vpop.permute.xlu0 %665
        %667 = vrot.lane.b32.xlu0 %v597, 122
        %v668 = vpop.permute.xlu0 %667
        %669 = vrot.lane.b32.xlu0 %v598, 122
        %v670 = vpop.permute.xlu0 %669
        %vm695 = vcmask 15360
        %696 = vst.msk [vmem:[%s260 + $0x2] sm:$0xff] %vm695, %v624
        %697 = vst.msk [vmem:[%s260 + $0x12] sm:$0xff] %vm695, %v626
        %698 = vst.msk [vmem:[%s260 + $0x22] sm:$0xff] %vm695, %v628
        %699 = vst.msk [vmem:[%s260 + $0x32] sm:$0xff] %vm695, %v630
        %700 = vst.msk [vmem:[%s260 + $0x42] sm:$0xff] %vm695, %v632
        %701 = vst.msk [vmem:[%s260 + $0x52] sm:$0xff] %vm695, %v634
        %702 = vst.msk [vmem:[%s260 + $0x62] sm:$0xff] %vm695, %v636
        %703 = vst.msk [vmem:[%s260 + $0x72] sm:$0xff] %vm695, %v638
        %704 = vst.msk [vmem:[%s260 + $0xc2] sm:$0xff] %vm695, %v640
        %705 = vst.msk [vmem:[%s260 + $0xd2] sm:$0xff] %vm695, %v642
        %706 = vst.msk [vmem:[%s260 + $0xe2] sm:$0xff] %vm695, %v644
        %707 = vst.msk [vmem:[%s260 + $0xf2] sm:$0xff] %vm695, %v646
        %708 = vst.msk [vmem:[%s260 + $0x102] sm:$0xff] %vm695, %v648
        %709 = vst.msk [vmem:[%s260 + $0x112] sm:$0xff] %vm695, %v650
        %710 = vst.msk [vmem:[%s260 + $0x122] sm:$0xff] %vm695, %v652
        %711 = vst.msk [vmem:[%s260 + $0x132] sm:$0xff] %vm695, %v654
        %712 = vst.msk [vmem:[%s260 + $0x182] sm:$0xff] %vm695, %v656
        %713 = vst.msk [vmem:[%s260 + $0x192] sm:$0xff] %vm695, %v658
        %714 = vst.msk [vmem:[%s260 + $0x1a2] sm:$0xff] %vm695, %v660
        %715 = vst.msk [vmem:[%s260 + $0x1b2] sm:$0xff] %vm695, %v662
        %716 = vst.msk [vmem:[%s260 + $0x1c2] sm:$0xff] %vm695, %v664
        %717 = vst.msk [vmem:[%s260 + $0x1d2] sm:$0xff] %vm695, %v666
        %718 = vst.msk [vmem:[%s260 + $0x1e2] sm:$0xff] %vm695, %v668
        %719 = vst.msk [vmem:[%s260 + $0x1f2] sm:$0xff] %vm695, %v670
        %v720 = vld [vmem:[%s118] sm:$0xff]
        %v721 = vld [vmem:[%s118 + $0x8] sm:$0xff]
        %v722 = vld [vmem:[%s118 + $0x10] sm:$0xff]
        %v723 = vld [vmem:[%s118 + $0x18] sm:$0xff]
        %v724 = vld [vmem:[%s118 + $0x20] sm:$0xff]
        %v725 = vld [vmem:[%s118 + $0x28] sm:$0xff]
        %v726 = vld [vmem:[%s118 + $0x30] sm:$0xff]
        %v727 = vld [vmem:[%s118 + $0x38] sm:$0xff]
        %v728 = vld [vmem:[%s118 + $0x40] sm:$0xff]
        %v729 = vld [vmem:[%s118 + $0x48] sm:$0xff]
        %v730 = vld [vmem:[%s118 + $0x50] sm:$0xff]
        %v731 = vld [vmem:[%s118 + $0x58] sm:$0xff]
        %v732 = vld [vmem:[%s118 + $0x60] sm:$0xff]
        %v733 = vld [vmem:[%s118 + $0x68] sm:$0xff]
        %v734 = vld [vmem:[%s118 + $0x70] sm:$0xff]
        %v735 = vld [vmem:[%s118 + $0x78] sm:$0xff]
        %v736 = vld [vmem:[%s118 + $0x80] sm:$0xff]
        %v737 = vld [vmem:[%s118 + $0x88] sm:$0xff]
        %v738 = vld [vmem:[%s118 + $0x90] sm:$0xff]
        %v739 = vld [vmem:[%s118 + $0x98] sm:$0xff]
        %v740 = vld [vmem:[%s118 + $0xa0] sm:$0xff]
        %v741 = vld [vmem:[%s118 + $0xa8] sm:$0xff]
        %v742 = vld [vmem:[%s118 + $0xb0] sm:$0xff]
        %v743 = vld [vmem:[%s118 + $0xb8] sm:$0xff]
        %768 = vrot.lane.b32.xlu0 %v720, 10
        %v769 = vpop.permute.xlu0 %768
        %770 = vrot.lane.b32.xlu0 %v721, 10
        %v771 = vpop.permute.xlu0 %770
        %772 = vrot.lane.b32.xlu0 %v722, 10
        %v773 = vpop.permute.xlu0 %772
        %774 = vrot.lane.b32.xlu0 %v723, 10
        %v775 = vpop.permute.xlu0 %774
        %776 = vrot.lane.b32.xlu0 %v724, 10
        %v777 = vpop.permute.xlu0 %776
        %778 = vrot.lane.b32.xlu0 %v725, 10
        %v779 = vpop.permute.xlu0 %778
        %780 = vrot.lane.b32.xlu0 %v726, 10
        %v781 = vpop.permute.xlu0 %780
        %782 = vrot.lane.b32.xlu0 %v727, 10
        %v783 = vpop.permute.xlu0 %782
        %784 = vrot.lane.b32.xlu0 %v728, 10
        %v785 = vpop.permute.xlu0 %784
        %786 = vrot.lane.b32.xlu0 %v729, 10
        %v787 = vpop.permute.xlu0 %786
        %788 = vrot.lane.b32.xlu0 %v730, 10
        %v789 = vpop.permute.xlu0 %788
        %790 = vrot.lane.b32.xlu0 %v731, 10
        %v791 = vpop.permute.xlu0 %790
        %792 = vrot.lane.b32.xlu0 %v732, 10
        %v793 = vpop.permute.xlu0 %792
        %794 = vrot.lane.b32.xlu0 %v733, 10
        %v795 = vpop.permute.xlu0 %794
        %796 = vrot.lane.b32.xlu0 %v734, 10
        %v797 = vpop.permute.xlu0 %796
        %798 = vrot.lane.b32.xlu0 %v735, 10
        %v799 = vpop.permute.xlu0 %798
        %800 = vrot.lane.b32.xlu0 %v736, 10
        %v801 = vpop.permute.xlu0 %800
        %802 = vrot.lane.b32.xlu0 %v737, 10
        %v803 = vpop.permute.xlu0 %802
        %804 = vrot.lane.b32.xlu0 %v738, 10
        %v805 = vpop.permute.xlu0 %804
        %806 = vrot.lane.b32.xlu0 %v739, 10
        %v807 = vpop.permute.xlu0 %806
        %808 = vrot.lane.b32.xlu0 %v740, 10
        %v809 = vpop.permute.xlu0 %808
        %810 = vrot.lane.b32.xlu0 %v741, 10
        %v811 = vpop.permute.xlu0 %810
        %812 = vrot.lane.b32.xlu0 %v742, 10
        %v813 = vpop.permute.xlu0 %812
        %814 = vrot.lane.b32.xlu0 %v743, 10
        %v815 = vpop.permute.xlu0 %814
        %vm840 = vcmask 97360
        %841 = vst.msk [vmem:[%s260 + $0x2] sm:$0xff] %vm840, %v769
        %842 = vst.msk [vmem:[%s260 + $0x12] sm:$0xff] %vm840, %v771
        %843 = vst.msk [vmem:[%s260 + $0x22] sm:$0xff] %vm840, %v773
        %844 = vst.msk [vmem:[%s260 + $0x32] sm:$0xff] %vm840, %v775
        %845 = vst.msk [vmem:[%s260 + $0x42] sm:$0xff] %vm840, %v777
        %846 = vst.msk [vmem:[%s260 + $0x52] sm:$0xff] %vm840, %v779
        %847 = vst.msk [vmem:[%s260 + $0x62] sm:$0xff] %vm840, %v781
        %848 = vst.msk [vmem:[%s260 + $0x72] sm:$0xff] %vm840, %v783
        %849 = vst.msk [vmem:[%s260 + $0xc2] sm:$0xff] %vm840, %v785
        %850 = vst.msk [vmem:[%s260 + $0xd2] sm:$0xff] %vm840, %v787
        %851 = vst.msk [vmem:[%s260 + $0xe2] sm:$0xff] %vm840, %v789
        %852 = vst.msk [vmem:[%s260 + $0xf2] sm:$0xff] %vm840, %v791
        %853 = vst.msk [vmem:[%s260 + $0x102] sm:$0xff] %vm840, %v793
        %854 = vst.msk [vmem:[%s260 + $0x112] sm:$0xff] %vm840, %v795
        %855 = vst.msk [vmem:[%s260 + $0x122] sm:$0xff] %vm840, %v797
        %856 = vst.msk [vmem:[%s260 + $0x132] sm:$0xff] %vm840, %v799
        %857 = vst.msk [vmem:[%s260 + $0x182] sm:$0xff] %vm840, %v801
        %858 = vst.msk [vmem:[%s260 + $0x192] sm:$0xff] %vm840, %v803
        %859 = vst.msk [vmem:[%s260 + $0x1a2] sm:$0xff] %vm840, %v805
        %860 = vst.msk [vmem:[%s260 + $0x1b2] sm:$0xff] %vm840, %v807
        %861 = vst.msk [vmem:[%s260 + $0x1c2] sm:$0xff] %vm840, %v809
        %862 = vst.msk [vmem:[%s260 + $0x1d2] sm:$0xff] %vm840, %v811
        %863 = vst.msk [vmem:[%s260 + $0x1e2] sm:$0xff] %vm840, %v813
        %864 = vst.msk [vmem:[%s260 + $0x1f2] sm:$0xff] %vm840, %v815
        %v865 = vld [vmem:[%s118 + $0x6] sm:$0x3]
        %v866 = vld [vmem:[%s118 + $0xe] sm:$0x3]
        %v867 = vld [vmem:[%s118 + $0x16] sm:$0x3]
        %v868 = vld [vmem:[%s118 + $0x1e] sm:$0x3]
        %v869 = vld [vmem:[%s118 + $0x26] sm:$0x3]
        %v870 = vld [vmem:[%s118 + $0x2e] sm:$0x3]
        %v871 = vld [vmem:[%s118 + $0x36] sm:$0x3]
        %v872 = vld [vmem:[%s118 + $0x3e] sm:$0x3]
        %v873 = vld [vmem:[%s118 + $0x46] sm:$0x3]
        %v874 = vld [vmem:[%s118 + $0x4e] sm:$0x3]
        %v875 = vld [vmem:[%s118 + $0x56] sm:$0x3]
        %v876 = vld [vmem:[%s118 + $0x5e] sm:$0x3]
        %v877 = vld [vmem:[%s118 + $0x66] sm:$0x3]
        %v878 = vld [vmem:[%s118 + $0x6e] sm:$0x3]
        %v879 = vld [vmem:[%s118 + $0x76] sm:$0x3]
        %v880 = vld [vmem:[%s118 + $0x7e] sm:$0x3]
        %v881 = vld [vmem:[%s118 + $0x86] sm:$0x3]
        %v882 = vld [vmem:[%s118 + $0x8e] sm:$0x3]
        %v883 = vld [vmem:[%s118 + $0x96] sm:$0x3]
        %v884 = vld [vmem:[%s118 + $0x9e] sm:$0x3]
        %v885 = vld [vmem:[%s118 + $0xa6] sm:$0x3]
        %v886 = vld [vmem:[%s118 + $0xae] sm:$0x3]
        %v887 = vld [vmem:[%s118 + $0xb6] sm:$0x3]
        %v888 = vld [vmem:[%s118 + $0xbe] sm:$0x3]
        %913 = vrot.lane.b32.xlu0 %v865, 122
        %v914 = vpop.permute.xlu0 %913
        %915 = vrot.lane.b32.xlu0 %v866, 122
        %v916 = vpop.permute.xlu0 %915
        %917 = vrot.lane.b32.xlu0 %v867, 122
        %v918 = vpop.permute.xlu0 %917
        %919 = vrot.lane.b32.xlu0 %v868, 122
        %v920 = vpop.permute.xlu0 %919
        %921 = vrot.lane.b32.xlu0 %v869, 122
        %v922 = vpop.permute.xlu0 %921
        %923 = vrot.lane.b32.xlu0 %v870, 122
        %v924 = vpop.permute.xlu0 %923
        %925 = vrot.lane.b32.xlu0 %v871, 122
        %v926 = vpop.permute.xlu0 %925
        %927 = vrot.lane.b32.xlu0 %v872, 122
        %v928 = vpop.permute.xlu0 %927
        %929 = vrot.lane.b32.xlu0 %v873, 122
        %v930 = vpop.permute.xlu0 %929
        %931 = vrot.lane.b32.xlu0 %v874, 122
        %v932 = vpop.permute.xlu0 %931
        %933 = vrot.lane.b32.xlu0 %v875, 122
        %v934 = vpop.permute.xlu0 %933
        %935 = vrot.lane.b32.xlu0 %v876, 122
        %v936 = vpop.permute.xlu0 %935
        %937 = vrot.lane.b32.xlu0 %v877, 122
        %v938 = vpop.permute.xlu0 %937
        %939 = vrot.lane.b32.xlu0 %v878, 122
        %v940 = vpop.permute.xlu0 %939
        %941 = vrot.lane.b32.xlu0 %v879, 122
        %v942 = vpop.permute.xlu0 %941
        %943 = vrot.lane.b32.xlu0 %v880, 122
        %v944 = vpop.permute.xlu0 %943
        %945 = vrot.lane.b32.xlu0 %v881, 122
        %v946 = vpop.permute.xlu0 %945
        %947 = vrot.lane.b32.xlu0 %v882, 122
        %v948 = vpop.permute.xlu0 %947
        %949 = vrot.lane.b32.xlu0 %v883, 122
        %v950 = vpop.permute.xlu0 %949
        %951 = vrot.lane.b32.xlu0 %v884, 122
        %v952 = vpop.permute.xlu0 %951
        %953 = vrot.lane.b32.xlu0 %v885, 122
        %v954 = vpop.permute.xlu0 %953
        %955 = vrot.lane.b32.xlu0 %v886, 122
        %v956 = vpop.permute.xlu0 %955
        %957 = vrot.lane.b32.xlu0 %v887, 122
        %v958 = vpop.permute.xlu0 %957
        %959 = vrot.lane.b32.xlu0 %v888, 122
        %v960 = vpop.permute.xlu0 %959
        %vm985 = vcmask 9216
        %986 = vst.msk [vmem:[%s260] sm:$0x3] %vm985, %v914
        %987 = vst.msk [vmem:[%s260 + $0x10] sm:$0x3] %vm985, %v916
        %988 = vst.msk [vmem:[%s260 + $0x20] sm:$0x3] %vm985, %v918
        %989 = vst.msk [vmem:[%s260 + $0x30] sm:$0x3] %vm985, %v920
        %990 = vst.msk [vmem:[%s260 + $0x40] sm:$0x3] %vm985, %v922
        %991 = vst.msk [vmem:[%s260 + $0x50] sm:$0x3] %vm985, %v924
        %992 = vst.msk [vmem:[%s260 + $0x60] sm:$0x3] %vm985, %v926
        %993 = vst.msk [vmem:[%s260 + $0x70] sm:$0x3] %vm985, %v928
        %994 = vst.msk [vmem:[%s260 + $0xc0] sm:$0x3] %vm985, %v930
        %995 = vst.msk [vmem:[%s260 + $0xd0] sm:$0x3] %vm985, %v932
        %996 = vst.msk [vmem:[%s260 + $0xe0] sm:$0x3] %vm985, %v934
        %997 = vst.msk [vmem:[%s260 + $0xf0] sm:$0x3] %vm985, %v936
        %998 = vst.msk [vmem:[%s260 + $0x100] sm:$0x3] %vm985, %v938
        %999 = vst.msk [vmem:[%s260 + $0x110] sm:$0x3] %vm985, %v940
        %1000 = vst.msk [vmem:[%s260 + $0x120] sm:$0x3] %vm985, %v942
        %1001 = vst.msk [vmem:[%s260 + $0x130] sm:$0x3] %vm985, %v944
        %1002 = vst.msk [vmem:[%s260 + $0x180] sm:$0x3] %vm985, %v946
        %1003 = vst.msk [vmem:[%s260 + $0x190] sm:$0x3] %vm985, %v948
        %1004 = vst.msk [vmem:[%s260 + $0x1a0] sm:$0x3] %vm985, %v950
        %1005 = vst.msk [vmem:[%s260 + $0x1b0] sm:$0x3] %vm985, %v952
        %1006 = vst.msk [vmem:[%s260 + $0x1c0] sm:$0x3] %vm985, %v954
        %1007 = vst.msk [vmem:[%s260 + $0x1d0] sm:$0x3] %vm985, %v956
        %1008 = vst.msk [vmem:[%s260 + $0x1e0] sm:$0x3] %vm985, %v958
        %1009 = vst.msk [vmem:[%s260 + $0x1f0] sm:$0x3] %vm985, %v960
        %v1010 = vld [vmem:[%s118 + $0x6] sm:$0x3]
        %v1011 = vld [vmem:[%s118 + $0xe] sm:$0x3]
        %v1012 = vld [vmem:[%s118 + $0x16] sm:$0x3]
        %v1013 = vld [vmem:[%s118 + $0x1e] sm:$0x3]
        %v1014 = vld [vmem:[%s118 + $0x26] sm:$0x3]
        %v1015 = vld [vmem:[%s118 + $0x2e] sm:$0x3]
        %v1016 = vld [vmem:[%s118 + $0x36] sm:$0x3]
        %v1017 = vld [vmem:[%s118 + $0x3e] sm:$0x3]
        %v1018 = vld [vmem:[%s118 + $0x46] sm:$0x3]
        %v1019 = vld [vmem:[%s118 + $0x4e] sm:$0x3]
        %v1020 = vld [vmem:[%s118 + $0x56] sm:$0x3]
        %v1021 = vld [vmem:[%s118 + $0x5e] sm:$0x3]
        %v1022 = vld [vmem:[%s118 + $0x66] sm:$0x3]
        %v1023 = vld [vmem:[%s118 + $0x6e] sm:$0x3]
        %v1024 = vld [vmem:[%s118 + $0x76] sm:$0x3]
        %v1025 = vld [vmem:[%s118 + $0x7e] sm:$0x3]
        %v1026 = vld [vmem:[%s118 + $0x86] sm:$0x3]
        %v1027 = vld [vmem:[%s118 + $0x8e] sm:$0x3]
        %v1028 = vld [vmem:[%s118 + $0x96] sm:$0x3]
        %v1029 = vld [vmem:[%s118 + $0x9e] sm:$0x3]
        %v1030 = vld [vmem:[%s118 + $0xa6] sm:$0x3]
        %v1031 = vld [vmem:[%s118 + $0xae] sm:$0x3]
        %v1032 = vld [vmem:[%s118 + $0xb6] sm:$0x3]
        %v1033 = vld [vmem:[%s118 + $0xbe] sm:$0x3]
        %1058 = vrot.lane.b32.xlu0 %v1010, 10
        %v1059 = vpop.permute.xlu0 %1058
        %1060 = vrot.lane.b32.xlu0 %v1011, 10
        %v1061 = vpop.permute.xlu0 %1060
        %1062 = vrot.lane.b32.xlu0 %v1012, 10
        %v1063 = vpop.permute.xlu0 %1062
        %1064 = vrot.lane.b32.xlu0 %v1013, 10
        %v1065 = vpop.permute.xlu0 %1064
        %1066 = vrot.lane.b32.xlu0 %v1014, 10
        %v1067 = vpop.permute.xlu0 %1066
        %1068 = vrot.lane.b32.xlu0 %v1015, 10
        %v1069 = vpop.permute.xlu0 %1068
        %1070 = vrot.lane.b32.xlu0 %v1016, 10
        %v1071 = vpop.permute.xlu0 %1070
        %1072 = vrot.lane.b32.xlu0 %v1017, 10
        %v1073 = vpop.permute.xlu0 %1072
        %1074 = vrot.lane.b32.xlu0 %v1018, 10
        %v1075 = vpop.permute.xlu0 %1074
        %1076 = vrot.lane.b32.xlu0 %v1019, 10
        %v1077 = vpop.permute.xlu0 %1076
        %1078 = vrot.lane.b32.xlu0 %v1020, 10
        %v1079 = vpop.permute.xlu0 %1078
        %1080 = vrot.lane.b32.xlu0 %v1021, 10
        %v1081 = vpop.permute.xlu0 %1080
        %1082 = vrot.lane.b32.xlu0 %v1022, 10
        %v1083 = vpop.permute.xlu0 %1082
        %1084 = vrot.lane.b32.xlu0 %v1023, 10
        %v1085 = vpop.permute.xlu0 %1084
        %1086 = vrot.lane.b32.xlu0 %v1024, 10
        %v1087 = vpop.permute.xlu0 %1086
        %1088 = vrot.lane.b32.xlu0 %v1025, 10
        %v1089 = vpop.permute.xlu0 %1088
        %1090 = vrot.lane.b32.xlu0 %v1026, 10
        %v1091 = vpop.permute.xlu0 %1090
        %1092 = vrot.lane.b32.xlu0 %v1027, 10
        %v1093 = vpop.permute.xlu0 %1092
        %1094 = vrot.lane.b32.xlu0 %v1028, 10
        %v1095 = vpop.permute.xlu0 %1094
        %1096 = vrot.lane.b32.xlu0 %v1029, 10
        %v1097 = vpop.permute.xlu0 %1096
        %1098 = vrot.lane.b32.xlu0 %v1030, 10
        %v1099 = vpop.permute.xlu0 %1098
        %1100 = vrot.lane.b32.xlu0 %v1031, 10
        %v1101 = vpop.permute.xlu0 %1100
        %1102 = vrot.lane.b32.xlu0 %v1032, 10
        %v1103 = vpop.permute.xlu0 %1102
        %1104 = vrot.lane.b32.xlu0 %v1033, 10
        %v1105 = vpop.permute.xlu0 %1104
        %vm1130 = vcmask 91216
        %1131 = vst.msk [vmem:[%s260] sm:$0x3] %vm1130, %v1059
        %1132 = vst.msk [vmem:[%s260 + $0x10] sm:$0x3] %vm1130, %v1061
        %1133 = vst.msk [vmem:[%s260 + $0x20] sm:$0x3] %vm1130, %v1063
        %1134 = vst.msk [vmem:[%s260 + $0x30] sm:$0x3] %vm1130, %v1065
        %1135 = vst.msk [vmem:[%s260 + $0x40] sm:$0x3] %vm1130, %v1067
        %1136 = vst.msk [vmem:[%s260 + $0x50] sm:$0x3] %vm1130, %v1069
        %1137 = vst.msk [vmem:[%s260 + $0x60] sm:$0x3] %vm1130, %v1071
        %1138 = vst.msk [vmem:[%s260 + $0x70] sm:$0x3] %vm1130, %v1073
        %1139 = vst.msk [vmem:[%s260 + $0xc0] sm:$0x3] %vm1130, %v1075
        %1140 = vst.msk [vmem:[%s260 + $0xd0] sm:$0x3] %vm1130, %v1077
        %1141 = vst.msk [vmem:[%s260 + $0xe0] sm:$0x3] %vm1130, %v1079
        %1142 = vst.msk [vmem:[%s260 + $0xf0] sm:$0x3] %vm1130, %v1081
        %1143 = vst.msk [vmem:[%s260 + $0x100] sm:$0x3] %vm1130, %v1083
        %1144 = vst.msk [vmem:[%s260 + $0x110] sm:$0x3] %vm1130, %v1085
        %1145 = vst.msk [vmem:[%s260 + $0x120] sm:$0x3] %vm1130, %v1087
        %1146 = vst.msk [vmem:[%s260 + $0x130] sm:$0x3] %vm1130, %v1089
        %1147 = vst.msk [vmem:[%s260 + $0x180] sm:$0x3] %vm1130, %v1091
        %1148 = vst.msk [vmem:[%s260 + $0x190] sm:$0x3] %vm1130, %v1093
        %1149 = vst.msk [vmem:[%s260 + $0x1a0] sm:$0x3] %vm1130, %v1095
        %1150 = vst.msk [vmem:[%s260 + $0x1b0] sm:$0x3] %vm1130, %v1097
        %1151 = vst.msk [vmem:[%s260 + $0x1c0] sm:$0x3] %vm1130, %v1099
        %1152 = vst.msk [vmem:[%s260 + $0x1d0] sm:$0x3] %vm1130, %v1101
        %1153 = vst.msk [vmem:[%s260 + $0x1e0] sm:$0x3] %vm1130, %v1103
        %1154 = vst.msk [vmem:[%s260 + $0x1f0] sm:$0x3] %vm1130, %v1105
        %v1155 = vld [vmem:[%s118] sm:$0x3]
        %v1156 = vld [vmem:[%s118 + $0x8] sm:$0x3]
        %v1157 = vld [vmem:[%s118 + $0x10] sm:$0x3]
        %v1158 = vld [vmem:[%s118 + $0x18] sm:$0x3]
        %v1159 = vld [vmem:[%s118 + $0x20] sm:$0x3]
        %v1160 = vld [vmem:[%s118 + $0x28] sm:$0x3]
        %v1161 = vld [vmem:[%s118 + $0x30] sm:$0x3]
        %v1162 = vld [vmem:[%s118 + $0x38] sm:$0x3]
        %v1163 = vld [vmem:[%s118 + $0x40] sm:$0x3]
        %v1164 = vld [vmem:[%s118 + $0x48] sm:$0x3]
        %v1165 = vld [vmem:[%s118 + $0x50] sm:$0x3]
        %v1166 = vld [vmem:[%s118 + $0x58] sm:$0x3]
        %v1167 = vld [vmem:[%s118 + $0x60] sm:$0x3]
        %v1168 = vld [vmem:[%s118 + $0x68] sm:$0x3]
        %v1169 = vld [vmem:[%s118 + $0x70] sm:$0x3]
        %v1170 = vld [vmem:[%s118 + $0x78] sm:$0x3]
        %v1171 = vld [vmem:[%s118 + $0x80] sm:$0x3]
        %v1172 = vld [vmem:[%s118 + $0x88] sm:$0x3]
        %v1173 = vld [vmem:[%s118 + $0x90] sm:$0x3]
        %v1174 = vld [vmem:[%s118 + $0x98] sm:$0x3]
        %v1175 = vld [vmem:[%s118 + $0xa0] sm:$0x3]
        %v1176 = vld [vmem:[%s118 + $0xa8] sm:$0x3]
        %v1177 = vld [vmem:[%s118 + $0xb0] sm:$0x3]
        %v1178 = vld [vmem:[%s118 + $0xb8] sm:$0x3]
        %1203 = vrot.lane.b32.xlu0 %v1155, 122
        %v1204 = vpop.permute.xlu0 %1203
        %1205 = vrot.lane.b32.xlu0 %v1156, 122
        %v1206 = vpop.permute.xlu0 %1205
        %1207 = vrot.lane.b32.xlu0 %v1157, 122
        %v1208 = vpop.permute.xlu0 %1207
        %1209 = vrot.lane.b32.xlu0 %v1158, 122
        %v1210 = vpop.permute.xlu0 %1209
        %1211 = vrot.lane.b32.xlu0 %v1159, 122
        %v1212 = vpop.permute.xlu0 %1211
        %1213 = vrot.lane.b32.xlu0 %v1160, 122
        %v1214 = vpop.permute.xlu0 %1213
        %1215 = vrot.lane.b32.xlu0 %v1161, 122
        %v1216 = vpop.permute.xlu0 %1215
        %1217 = vrot.lane.b32.xlu0 %v1162, 122
        %v1218 = vpop.permute.xlu0 %1217
        %1219 = vrot.lane.b32.xlu0 %v1163, 122
        %v1220 = vpop.permute.xlu0 %1219
        %1221 = vrot.lane.b32.xlu0 %v1164, 122
        %v1222 = vpop.permute.xlu0 %1221
        %1223 = vrot.lane.b32.xlu0 %v1165, 122
        %v1224 = vpop.permute.xlu0 %1223
        %1225 = vrot.lane.b32.xlu0 %v1166, 122
        %v1226 = vpop.permute.xlu0 %1225
        %1227 = vrot.lane.b32.xlu0 %v1167, 122
        %v1228 = vpop.permute.xlu0 %1227
        %1229 = vrot.lane.b32.xlu0 %v1168, 122
        %v1230 = vpop.permute.xlu0 %1229
        %1231 = vrot.lane.b32.xlu0 %v1169, 122
        %v1232 = vpop.permute.xlu0 %1231
        %1233 = vrot.lane.b32.xlu0 %v1170, 122
        %v1234 = vpop.permute.xlu0 %1233
        %1235 = vrot.lane.b32.xlu0 %v1171, 122
        %v1236 = vpop.permute.xlu0 %1235
        %1237 = vrot.lane.b32.xlu0 %v1172, 122
        %v1238 = vpop.permute.xlu0 %1237
        %1239 = vrot.lane.b32.xlu0 %v1173, 122
        %v1240 = vpop.permute.xlu0 %1239
        %1241 = vrot.lane.b32.xlu0 %v1174, 122
        %v1242 = vpop.permute.xlu0 %1241
        %1243 = vrot.lane.b32.xlu0 %v1175, 122
        %v1244 = vpop.permute.xlu0 %1243
        %1245 = vrot.lane.b32.xlu0 %v1176, 122
        %v1246 = vpop.permute.xlu0 %1245
        %1247 = vrot.lane.b32.xlu0 %v1177, 122
        %v1248 = vpop.permute.xlu0 %1247
        %1249 = vrot.lane.b32.xlu0 %v1178, 122
        %v1250 = vpop.permute.xlu0 %1249
        %1275 = vst.msk [vmem:[%s260 + $0xa] sm:$0x3] %vm985, %v1204
        %1276 = vst.msk [vmem:[%s260 + $0x1a] sm:$0x3] %vm985, %v1206
        %1277 = vst.msk [vmem:[%s260 + $0x2a] sm:$0x3] %vm985, %v1208
        %1278 = vst.msk [vmem:[%s260 + $0x3a] sm:$0x3] %vm985, %v1210
        %1279 = vst.msk [vmem:[%s260 + $0x4a] sm:$0x3] %vm985, %v1212
        %1280 = vst.msk [vmem:[%s260 + $0x5a] sm:$0x3] %vm985, %v1214
        %1281 = vst.msk [vmem:[%s260 + $0x6a] sm:$0x3] %vm985, %v1216
        %1282 = vst.msk [vmem:[%s260 + $0x7a] sm:$0x3] %vm985, %v1218
        %1283 = vst.msk [vmem:[%s260 + $0xca] sm:$0x3] %vm985, %v1220
        %1284 = vst.msk [vmem:[%s260 + $0xda] sm:$0x3] %vm985, %v1222
        %1285 = vst.msk [vmem:[%s260 + $0xea] sm:$0x3] %vm985, %v1224
        %1286 = vst.msk [vmem:[%s260 + $0xfa] sm:$0x3] %vm985, %v1226
        %1287 = vst.msk [vmem:[%s260 + $0x10a] sm:$0x3] %vm985, %v1228
        %1288 = vst.msk [vmem:[%s260 + $0x11a] sm:$0x3] %vm985, %v1230
        %1289 = vst.msk [vmem:[%s260 + $0x12a] sm:$0x3] %vm985, %v1232
        %1290 = vst.msk [vmem:[%s260 + $0x13a] sm:$0x3] %vm985, %v1234
        %1291 = vst.msk [vmem:[%s260 + $0x18a] sm:$0x3] %vm985, %v1236
        %1292 = vst.msk [vmem:[%s260 + $0x19a] sm:$0x3] %vm985, %v1238
        %1293 = vst.msk [vmem:[%s260 + $0x1aa] sm:$0x3] %vm985, %v1240
        %1294 = vst.msk [vmem:[%s260 + $0x1ba] sm:$0x3] %vm985, %v1242
        %1295 = vst.msk [vmem:[%s260 + $0x1ca] sm:$0x3] %vm985, %v1244
        %1296 = vst.msk [vmem:[%s260 + $0x1da] sm:$0x3] %vm985, %v1246
        %1297 = vst.msk [vmem:[%s260 + $0x1ea] sm:$0x3] %vm985, %v1248
        %1298 = vst.msk [vmem:[%s260 + $0x1fa] sm:$0x3] %vm985, %v1250
        %v1299 = vld [vmem:[%s118] sm:$0x3]
        %v1300 = vld [vmem:[%s118 + $0x8] sm:$0x3]
        %v1301 = vld [vmem:[%s118 + $0x10] sm:$0x3]
        %v1302 = vld [vmem:[%s118 + $0x18] sm:$0x3]
        %v1303 = vld [vmem:[%s118 + $0x20] sm:$0x3]
        %v1304 = vld [vmem:[%s118 + $0x28] sm:$0x3]
        %v1305 = vld [vmem:[%s118 + $0x30] sm:$0x3]
        %v1306 = vld [vmem:[%s118 + $0x38] sm:$0x3]
        %v1307 = vld [vmem:[%s118 + $0x40] sm:$0x3]
        %v1308 = vld [vmem:[%s118 + $0x48] sm:$0x3]
        %v1309 = vld [vmem:[%s118 + $0x50] sm:$0x3]
        %v1310 = vld [vmem:[%s118 + $0x58] sm:$0x3]
        %v1311 = vld [vmem:[%s118 + $0x60] sm:$0x3]
        %v1312 = vld [vmem:[%s118 + $0x68] sm:$0x3]
        %v1313 = vld [vmem:[%s118 + $0x70] sm:$0x3]
        %v1314 = vld [vmem:[%s118 + $0x78] sm:$0x3]
        %v1315 = vld [vmem:[%s118 + $0x80] sm:$0x3]
        %v1316 = vld [vmem:[%s118 + $0x88] sm:$0x3]
        %v1317 = vld [vmem:[%s118 + $0x90] sm:$0x3]
        %v1318 = vld [vmem:[%s118 + $0x98] sm:$0x3]
        %v1319 = vld [vmem:[%s118 + $0xa0] sm:$0x3]
        %v1320 = vld [vmem:[%s118 + $0xa8] sm:$0x3]
        %v1321 = vld [vmem:[%s118 + $0xb0] sm:$0x3]
        %v1322 = vld [vmem:[%s118 + $0xb8] sm:$0x3]
        %1347 = vrot.lane.b32.xlu0 %v1299, 10
        %v1348 = vpop.permute.xlu0 %1347
        %1349 = vrot.lane.b32.xlu0 %v1300, 10
        %v1350 = vpop.permute.xlu0 %1349
        %1351 = vrot.lane.b32.xlu0 %v1301, 10
        %v1352 = vpop.permute.xlu0 %1351
        %1353 = vrot.lane.b32.xlu0 %v1302, 10
        %v1354 = vpop.permute.xlu0 %1353
        %1355 = vrot.lane.b32.xlu0 %v1303, 10
        %v1356 = vpop.permute.xlu0 %1355
        %1357 = vrot.lane.b32.xlu0 %v1304, 10
        %v1358 = vpop.permute.xlu0 %1357
        %1359 = vrot.lane.b32.xlu0 %v1305, 10
        %v1360 = vpop.permute.xlu0 %1359
        %1361 = vrot.lane.b32.xlu0 %v1306, 10
        %v1362 = vpop.permute.xlu0 %1361
        %1363 = vrot.lane.b32.xlu0 %v1307, 10
        %v1364 = vpop.permute.xlu0 %1363
        %1365 = vrot.lane.b32.xlu0 %v1308, 10
        %v1366 = vpop.permute.xlu0 %1365
        %1367 = vrot.lane.b32.xlu0 %v1309, 10
        %v1368 = vpop.permute.xlu0 %1367
        %1369 = vrot.lane.b32.xlu0 %v1310, 10
        %v1370 = vpop.permute.xlu0 %1369
        %1371 = vrot.lane.b32.xlu0 %v1311, 10
        %v1372 = vpop.permute.xlu0 %1371
        %1373 = vrot.lane.b32.xlu0 %v1312, 10
        %v1374 = vpop.permute.xlu0 %1373
        %1375 = vrot.lane.b32.xlu0 %v1313, 10
        %v1376 = vpop.permute.xlu0 %1375
        %1377 = vrot.lane.b32.xlu0 %v1314, 10
        %v1378 = vpop.permute.xlu0 %1377
        %1379 = vrot.lane.b32.xlu0 %v1315, 10
        %v1380 = vpop.permute.xlu0 %1379
        %1381 = vrot.lane.b32.xlu0 %v1316, 10
        %v1382 = vpop.permute.xlu0 %1381
        %1383 = vrot.lane.b32.xlu0 %v1317, 10
        %v1384 = vpop.permute.xlu0 %1383
        %1385 = vrot.lane.b32.xlu0 %v1318, 10
        %v1386 = vpop.permute.xlu0 %1385
        %1387 = vrot.lane.b32.xlu0 %v1319, 10
        %v1388 = vpop.permute.xlu0 %1387
        %1389 = vrot.lane.b32.xlu0 %v1320, 10
        %v1390 = vpop.permute.xlu0 %1389
        %1391 = vrot.lane.b32.xlu0 %v1321, 10
        %v1392 = vpop.permute.xlu0 %1391
        %1393 = vrot.lane.b32.xlu0 %v1322, 10
        %v1394 = vpop.permute.xlu0 %1393
        %1419 = vst.msk [vmem:[%s260 + $0xa] sm:$0x3] %vm1130, %v1348
        %1420 = vst.msk [vmem:[%s260 + $0x1a] sm:$0x3] %vm1130, %v1350
        %1421 = vst.msk [vmem:[%s260 + $0x2a] sm:$0x3] %vm1130, %v1352
        %1422 = vst.msk [vmem:[%s260 + $0x3a] sm:$0x3] %vm1130, %v1354
        %1423 = vst.msk [vmem:[%s260 + $0x4a] sm:$0x3] %vm1130, %v1356
        %1424 = vst.msk [vmem:[%s260 + $0x5a] sm:$0x3] %vm1130, %v1358
        %1425 = vst.msk [vmem:[%s260 + $0x6a] sm:$0x3] %vm1130, %v1360
        %1426 = vst.msk [vmem:[%s260 + $0x7a] sm:$0x3] %vm1130, %v1362
        %1427 = vst.msk [vmem:[%s260 + $0xca] sm:$0x3] %vm1130, %v1364
        %1428 = vst.msk [vmem:[%s260 + $0xda] sm:$0x3] %vm1130, %v1366
        %1429 = vst.msk [vmem:[%s260 + $0xea] sm:$0x3] %vm1130, %v1368
        %1430 = vst.msk [vmem:[%s260 + $0xfa] sm:$0x3] %vm1130, %v1370
        %1431 = vst.msk [vmem:[%s260 + $0x10a] sm:$0x3] %vm1130, %v1372
        %1432 = vst.msk [vmem:[%s260 + $0x11a] sm:$0x3] %vm1130, %v1374
        %1433 = vst.msk [vmem:[%s260 + $0x12a] sm:$0x3] %vm1130, %v1376
        %1434 = vst.msk [vmem:[%s260 + $0x13a] sm:$0x3] %vm1130, %v1378
        %1435 = vst.msk [vmem:[%s260 + $0x18a] sm:$0x3] %vm1130, %v1380
        %1436 = vst.msk [vmem:[%s260 + $0x19a] sm:$0x3] %vm1130, %v1382
        %1437 = vst.msk [vmem:[%s260 + $0x1aa] sm:$0x3] %vm1130, %v1384
        %1438 = vst.msk [vmem:[%s260 + $0x1ba] sm:$0x3] %vm1130, %v1386
        %1439 = vst.msk [vmem:[%s260 + $0x1ca] sm:$0x3] %vm1130, %v1388
        %1440 = vst.msk [vmem:[%s260 + $0x1da] sm:$0x3] %vm1130, %v1390
        %1441 = vst.msk [vmem:[%s260 + $0x1ea] sm:$0x3] %vm1130, %v1392
        %1442 = vst.msk [vmem:[%s260 + $0x1fa] sm:$0x3] %vm1130, %v1394
        %s1443 = scalar_lea.vmem %s137, 128 [#allocation5]
        %v1444 = vld [vmem:[%s1443] sm:$0xff]
        %v1445 = vld [vmem:[%s1443 + $0x8] sm:$0xf]
        %v1446 = vld [vmem:[%s1443 + $0x10] sm:$0xff]
        %v1447 = vld [vmem:[%s1443 + $0x18] sm:$0xf]
        %v1448 = vld [vmem:[%s1443 + $0xc0] sm:$0xff]
        %v1449 = vld [vmem:[%s1443 + $0xc8] sm:$0xf]
        %v1450 = vld [vmem:[%s1443 + $0xd0] sm:$0xff]
        %v1451 = vld [vmem:[%s1443 + $0xd8] sm:$0xf]
        %v1452 = vld [vmem:[%s1443 + $0x180] sm:$0xff]
        %v1453 = vld [vmem:[%s1443 + $0x188] sm:$0xf]
        %v1454 = vld [vmem:[%s1443 + $0x190] sm:$0xff]
        %v1455 = vld [vmem:[%s1443 + $0x198] sm:$0xf]
        %vm1456 = vcmask 97280
        %1457 = vst.msk [vmem:[%s137] sm:$0xff] %vm1456, %v1444
        %vm1458 = vcmask 93184
        %1459 = vst.msk [vmem:[%s137 + $0x8] sm:$0xf] %vm1458, %v1445
        %1460 = vst.msk [vmem:[%s137 + $0x10] sm:$0xff] %vm1456, %v1446
        %1461 = vst.msk [vmem:[%s137 + $0x18] sm:$0xf] %vm1458, %v1447
        %1462 = vst.msk [vmem:[%s137 + $0xc0] sm:$0xff] %vm1456, %v1448
        %1463 = vst.msk [vmem:[%s137 + $0xc8] sm:$0xf] %vm1458, %v1449
        %1464 = vst.msk [vmem:[%s137 + $0xd0] sm:$0xff] %vm1456, %v1450
        %1465 = vst.msk [vmem:[%s137 + $0xd8] sm:$0xf] %vm1458, %v1451
        %1466 = vst.msk [vmem:[%s137 + $0x180] sm:$0xff] %vm1456, %v1452
        %1467 = vst.msk [vmem:[%s137 + $0x188] sm:$0xf] %vm1458, %v1453
        %1468 = vst.msk [vmem:[%s137 + $0x190] sm:$0xff] %vm1456, %v1454
        %1469 = vst.msk [vmem:[%s137 + $0x198] sm:$0xf] %vm1458, %v1455
        %v1470 = vld [vmem:[%s260] sm:$0xff]
        %v1471 = vld [vmem:[%s260 + $0x8] sm:$0xf]
        %v1472 = vld [vmem:[%s260 + $0x10] sm:$0xff]
        %v1473 = vld [vmem:[%s260 + $0x18] sm:$0xf]
        %v1474 = vld [vmem:[%s260 + $0xc0] sm:$0xff]
        %v1475 = vld [vmem:[%s260 + $0xc8] sm:$0xf]
        %v1476 = vld [vmem:[%s260 + $0xd0] sm:$0xff]
        %v1477 = vld [vmem:[%s260 + $0xd8] sm:$0xf]
        %v1478 = vld [vmem:[%s260 + $0x180] sm:$0xff]
        %v1479 = vld [vmem:[%s260 + $0x188] sm:$0xf]
        %v1480 = vld [vmem:[%s260 + $0x190] sm:$0xff]
        %v1481 = vld [vmem:[%s260 + $0x198] sm:$0xf]
        %s1482 = scalar_lea.vmem %s137, 160 [#allocation5]
        %1483 = vst.msk [vmem:[%s1482] sm:$0xff] %vm1456, %v1470
        %1484 = vst.msk [vmem:[%s1482 + $0x8] sm:$0xf] %vm1458, %v1471
        %1485 = vst.msk [vmem:[%s1482 + $0x10] sm:$0xff] %vm1456, %v1472
        %1486 = vst.msk [vmem:[%s1482 + $0x18] sm:$0xf] %vm1458, %v1473
        %1487 = vst.msk [vmem:[%s1482 + $0xc0] sm:$0xff] %vm1456, %v1474
        %1488 = vst.msk [vmem:[%s1482 + $0xc8] sm:$0xf] %vm1458, %v1475
        %1489 = vst.msk [vmem:[%s1482 + $0xd0] sm:$0xff] %vm1456, %v1476
        %1490 = vst.msk [vmem:[%s1482 + $0xd8] sm:$0xf] %vm1458, %v1477
        %1491 = vst.msk [vmem:[%s1482 + $0x180] sm:$0xff] %vm1456, %v1478
        %1492 = vst.msk [vmem:[%s1482 + $0x188] sm:$0xf] %vm1458, %v1479
        %1493 = vst.msk [vmem:[%s1482 + $0x190] sm:$0xff] %vm1456, %v1480
        %1494 = vst.msk [vmem:[%s1482 + $0x198] sm:$0xf] %vm1458, %v1481
        %s1495 = sand.u32 %s52, 1
        %s1496 = scalar_lea.sflag [#allocation4], %s1495
        %s1497 = sand.u32 %s52, 1
        %s1498 = smul.addr %s1497, 576
        %s1499 = scalar_lea.vmem [#allocation5], %s1498
        // Predicated region
        $region29: #{tpu_custom_call.1} parent=23 // pred_check
          %p1500 = pneg %p62
        $region30: #{tpu_custom_call.1} parent=23 // pred_check_branch
          %1502 = sbr.rel (%p1500) target = $region32
        $region31: #{tpu_custom_call.1} parent=23 // pred_region
          %s1503 = smul.u32 3, %s18
          %1505 = vsyncadd %s1496, 0
          %s1506 = smul.addr %s1503, 24
          %s1507 = smul.addr %s1506, 8
          %s1508 = scalar_lea.hbm %s1, %s1507
          %s1509 = sshll.u32 %s1499, 4
          %s1510 = int_to_ptr.vmem [resolvable:$true] %s1509
          %s1511 = sshll.u32 %s1508, 4
          %s1512 = int_to_ptr.hbm [resolvable:$true] %s1511
          %1517 = dma.vmem_to_hbm [thread:$0]  %s1510, 9216, %s1512, %s1496, 128, 128, 8
        $region32: #{tpu_custom_call.1} parent=23 // pred_fallthru
          _
      $region24: #{tpu_custom_call.1} parent=5 // pred_fallthru
        _
      %p1518 = scmp.le.s32.totalorder 2, %s13
      // Predicated region
      $region33: #{tpu_custom_call.1} parent=5 // pred_check
        %p1519 = pneg %p1518
      $region34: #{tpu_custom_call.1} parent=5 // pred_check_branch
        %1521 = sbr.rel (%p1519) target = $region36
      $region35: #{tpu_custom_call.1} parent=5 // pred_region
        %s1522 = ssub.s32 %s13, 2
        // Predicated region
        $region37: #{tpu_custom_call.1} parent=35 // pred_check
          %p1523 = pneg %p68
        $region38: #{tpu_custom_call.1} parent=35 // pred_check_branch
          %1525 = sbr.rel (%p1523) target = $region40
        $region39: #{tpu_custom_call.1} parent=35 // pred_region
          %s1526 = sand.u32 %s53, 1
          %s1527 = scalar_lea.sflag [#allocation4], %s1526
          %s1528 = sand.u32 %s53, 1
          %s1529 = smul.addr %s1528, 576
          %s1530 = scalar_lea.vmem [#allocation5], %s1529
          %1532 = dma.done %s1527, 9216
        $region40: #{tpu_custom_call.1} parent=35 // pred_fallthru
          _
      $region36: #{tpu_custom_call.1} parent=5 // pred_fallthru
        _
    $region6: #{tpu_custom_call.1} parent=1 // loop_footer
      %s17 = sadd.s32 1, %s13
    $region7: #{tpu_custom_call.1} parent=1 // loop_footer_branch
      %12 = sbr.rel target = $region3
    $region8: #{tpu_custom_call.1} parent=1 // loop_exit
      _
    %1533 = vsyncpa [#allocation3], 1
    %s1534 = scalar_lea.sflag [#allocation3], 1
    %1535 = vsyncpa %s1534, 1
    %1536 = vsyncpa [#allocation4], 1
    %s1537 = scalar_lea.sflag [#allocation4], 1
    %1538 = vsyncpa %s1537, 1

</llo_original>
